<compile_context>
chip_gen: v7x
topology: tpu7x:2x2x1
jax: 0.10.0
libtpu: 0.0.40
codegen_flags: <defaults>
</compile_context>

<pallas_src>
import jax
import jax.numpy as jnp
from jax.experimental import pallas as pl
from jax.experimental.pallas import tpu as pltpu


def _fill_conv_im2col(ref, row0, y, D, nodes, E):
    """Scatter the 4 shifted conv taps of `y` ((E, D) edge features) into the im2col
    scratch rows [row0, row0+nodes), lane block k at columns [k*D, (k+1)*D).

    im2col[row0+t, k*D + c] == ypad[t+k, c] where ypad is `y` zero-padded by 2 rows on
    each side (Conv1d(kernel=4, padding=2) => output length nodes = E+1).  Only the pad
    cells are zeroed; they are never touched by the data stores, and the data cells are
    fully rewritten every grid step, so no full-slab re-zero is needed.
    """
    z1 = jnp.zeros((1, D), jnp.float32)
    z2 = jnp.zeros((2, D), jnp.float32)
    # tap k=0: output row t reads y[t-2]
    ref[row0:row0 + 2, 0:D] = z2
    ref[row0 + 2:row0 + nodes, 0:D] = y[0:E - 1]
    # tap k=1: output row t reads y[t-1]
    ref[row0:row0 + 1, D:2 * D] = z1
    ref[row0 + 1:row0 + nodes, D:2 * D] = y
    # tap k=2: output row t reads y[t]
    ref[row0:row0 + E, 2 * D:3 * D] = y
    ref[row0 + E:row0 + nodes, 2 * D:3 * D] = z1
    # tap k=3: output row t reads y[t+1]
    ref[row0:row0 + E - 1, 3 * D:4 * D] = y[1:E]
    ref[row0 + E - 1:row0 + nodes, 3 * D:4 * D] = z2


def edge_embed_kernel(pos0_ref, pos1_ref,
                      w_v_ref, w_a1_ref, b_a1_ref, w_a2_ref, b_a2_ref,
                      wc_a_ref, b_ca_ref, wc_v_ref,
                      out_ref,
                      im2col_a_ref, im2col_v_ref):
    # pos*_ref: (1, nodes, 3); w_v_ref: (4, vdim); w_a1_ref: (4, adim); b_*: (1, adim);
    # w_a2_ref: (adim, adim); wc_a_ref: (4*adim, adim) tap-stacked; wc_v_ref: (4*vdim, vdim);
    # out_ref: (1, nodes, adim + 3*vdim) fused lane-dense slab;
    # im2col_a_ref: (nodes, 4*adim); im2col_v_ref: (3*nodes, 4*vdim).
    _, nodes, _ = pos0_ref.shape
    E = nodes - 1
    adim = b_a1_ref.shape[1]
    vdim = w_v_ref.shape[1]

    p0 = pos0_ref[0].astype(jnp.float32)          # (nodes, 3)
    p1 = pos1_ref[0].astype(jnp.float32)

    # relative vectors, order matches torch.stack([...], dim=2)
    d = (p0[1:] - p0[:-1],
         p1[1:] - p1[:-1],
         p1[:-1] - p0[1:],
         p1[1:] - p0[:-1])                        # each (E, 3)

    # ---------------- scalar channel (adim on lanes) ----------------
    w_a1 = w_a1_ref[...]                          # (4, adim)
    h = jnp.zeros((E, adim), jnp.float32) + b_a1_ref[...]
    for i in range(4):
        # tiny (E,3) lane reduce, off the hot path
        ni = jnp.sqrt(jnp.sum(d[i] * d[i], axis=-1, keepdims=True))   # (E, 1)
        h = h + ni * w_a1[i:i + 1, :]             # broadcast MAC instead of K=4 matmul
    h = jnp.where(h > 0.0, h, 0.2 * h)            # LeakyReLU(0.2)
    y_a = jnp.dot(h, w_a2_ref[...],
                  preferred_element_type=jnp.float32) + b_a2_ref[...]  # (E, adim)

    # Conv1d(adim, adim, 4, pad=2) as ONE matmul with K = 4*adim (im2col over the taps)
    _fill_conv_im2col(im2col_a_ref, 0, y_a, adim, nodes, E)
    a_conv = jnp.dot(im2col_a_ref[...], wc_a_ref[...],
                     preferred_element_type=jnp.float32) + b_ca_ref[...]  # (nodes, adim)
    out_ref[0, :, 0:adim] = a_conv.astype(out_ref.dtype)

    # -------- vector channel (vdim on lanes, 3 components batched along M) --------
    w_v = w_v_ref[...]                            # (4, vdim)
    for c in range(3):
        yv = jnp.zeros((E, vdim), jnp.float32)
        for i in range(4):
            yv = yv + d[i][:, c:c + 1] * w_v[i:i + 1, :]               # (E, vdim)
        _fill_conv_im2col(im2col_v_ref, c * nodes, yv, vdim, nodes, E)
    # one matmul for all 3 components and all 4 taps: (3*nodes, 4*vdim) @ (4*vdim, vdim)
    v_conv = jnp.dot(im2col_v_ref[...], wc_v_ref[...],
                     preferred_element_type=jnp.float32)                # (3*nodes, vdim)
    for c in range(3):
        out_ref[0, :, adim + c * vdim:adim + (c + 1) * vdim] = (
            v_conv[c * nodes:(c + 1) * nodes].astype(out_ref.dtype))


def edge_relative_embed_mlp_path(pos0, pos1, params):
    """pos0, pos1: (batch, nodes, 3).  Returns (a_out (B,nodes,adim), v_out (B,nodes,vdim,3))."""
    batch, nodes, _ = pos0.shape
    assert nodes >= 3
    adim = params["w_a2"].shape[0]
    vdim = params["w_v"].shape[0]
    width = adim + 3 * vdim

    # layout plumbing: transposed / tap-stacked weights so kernel matmuls are
    # (rows, cin) @ (cin, cout) and the conv is a single K=4*dim contraction.
    w_v_t = jnp.transpose(params["w_v"])                                  # (4, vdim)
    w_a1_t = jnp.transpose(params["w_a1"])                                # (4, adim)
    w_a2_t = jnp.transpose(params["w_a2"])                                # (adim, adim)
    b_a1 = params["b_a1"].reshape(1, adim)
    b_a2 = params["b_a2"].reshape(1, adim)
    b_ca = params["b_ca"].reshape(1, adim)
    wc_a_stk = jnp.transpose(params["wc_a"], (2, 1, 0)).reshape(4 * adim, adim)
    wc_v_stk = jnp.transpose(params["wc_v"], (2, 1, 0)).reshape(4 * vdim, vdim)

    fused = pl.pallas_call(
        edge_embed_kernel,
        out_shape=jax.ShapeDtypeStruct((batch, nodes, width), pos0.dtype),
        grid_spec=pltpu.PrefetchScalarGridSpec(
            num_scalar_prefetch=0,
            grid=(batch,),
            in_specs=[
                pl.BlockSpec((1, nodes, 3), lambda b: (b, 0, 0)),
                pl.BlockSpec((1, nodes, 3), lambda b: (b, 0, 0)),
                pl.BlockSpec((4, vdim), lambda b: (0, 0)),
                pl.BlockSpec((4, adim), lambda b: (0, 0)),
                pl.BlockSpec((1, adim), lambda b: (0, 0)),
                pl.BlockSpec((adim, adim), lambda b: (0, 0)),
                pl.BlockSpec((1, adim), lambda b: (0, 0)),
                pl.BlockSpec((4 * adim, adim), lambda b: (0, 0)),
                pl.BlockSpec((1, adim), lambda b: (0, 0)),
                pl.BlockSpec((4 * vdim, vdim), lambda b: (0, 0)),
            ],
            out_specs=pl.BlockSpec((1, nodes, width), lambda b: (b, 0, 0)),
            scratch_shapes=[
                pltpu.VMEM((nodes, 4 * adim), jnp.float32),       # im2col, scalar conv
                pltpu.VMEM((3 * nodes, 4 * vdim), jnp.float32),   # im2col, vector conv (3 comps on M)
            ],
        ),
        compiler_params=pltpu.CompilerParams(
            dimension_semantics=("parallel",),        # megacore-shard the batch axis
            vmem_limit_bytes=64 * 1024 * 1024,
        ),
    )(pos0, pos1, w_v_t, w_a1_t, b_a1, w_a2_t, b_a2, wc_a_stk, b_ca, wc_v_stk)

    # split the fused lane-dense slab back to the PyTorch layout (wrapper plumbing only)
    a_out = fused[..., :adim]
    v_out = jnp.transpose(fused[..., adim:].reshape(batch, nodes, 3, vdim), (0, 1, 3, 2))
    return a_out, v_out


def edge_relative_embed_ref(pos0, pos1, p):
    """Pure-JAX reference mirroring the PyTorch module."""
    d00 = pos0[:, 1:] - pos0[:, :-1]
    d11 = pos1[:, 1:] - pos1[:, :-1]
    d01 = pos1[:, :-1] - pos0[:, 1:]
    d10 = pos1[:, 1:] - pos0[:, :-1]
    vecs = jnp.stack([d00, d11, d01, d10], axis=2)           # (B, E, 4, 3)
    norms = jnp.sqrt(jnp.sum(vecs * vecs, axis=-1))          # (B, E, 4)

    h = norms @ p["w_a1"].T + p["b_a1"]
    h = jnp.where(h > 0, h, 0.2 * h)
    y_a = h @ p["w_a2"].T + p["b_a2"]                        # (B, E, adim)
    y_v = jnp.einsum("oi,beik->beok", p["w_v"], vecs)        # (B, E, vdim, 3)

    B, E, adim = y_a.shape
    nodes = E + 1
    ypad_a = jnp.pad(y_a, ((0, 0), (2, 2), (0, 0)))
    a_out = p["b_ca"][None, None, :] + sum(
        jnp.einsum("bec,oc->beo", ypad_a[:, k:k + nodes], p["wc_a"][:, :, k])
        for k in range(4))
    ypad_v = jnp.pad(y_v, ((0, 0), (2, 2), (0, 0), (0, 0)))
    v_out = sum(
        jnp.einsum("beck,oc->beok", ypad_v[:, k:k + nodes], p["wc_v"][:, :, k])
        for k in range(4))
    return a_out, v_out


if __name__ == "__main__":
    batch, nodes = 2, 8
    adim, vdim = 32, 32        # fused output width = adim + 3*vdim = 128 (lane-dense)

    key = jax.random.PRNGKey(0)
    ks = jax.random.split(key, 10)

    pos0 = jax.random.normal(ks[0], (batch, nodes, 3), dtype=jnp.float32)
    pos1 = pos0 + 0.1 * jax.random.normal(ks[1], (batch, nodes, 3), dtype=jnp.float32)

    params = dict(
        w_v=(4 ** -0.5) * jax.random.normal(ks[2], (vdim, 4), jnp.float32),        # VecLinear.self_init
        w_a1=0.5 * jax.random.normal(ks[3], (adim, 4), jnp.float32),
        b_a1=0.1 * jax.random.normal(ks[4], (adim,), jnp.float32),
        w_a2=(adim ** -0.5) * jax.random.normal(ks[5], (adim, adim), jnp.float32),
        b_a2=0.1 * jax.random.normal(ks[6], (adim,), jnp.float32),
        wc_a=((adim * 4) ** -0.5) * jax.random.normal(ks[7], (adim, adim, 4), jnp.float32),
        b_ca=0.1 * jax.random.normal(ks[8], (adim,), jnp.float32),
        wc_v=((vdim * 4) ** -0.5) * jax.random.normal(ks[9], (vdim, vdim, 4), jnp.float32),
    )

    a_out, v_out = edge_relative_embed_mlp_path(pos0, pos1, params)
    a_out, v_out = jax.block_until_ready((a_out, v_out))

    a_ref, v_ref = edge_relative_embed_ref(pos0, pos1, params)
    assert a_out.shape == (batch, nodes, adim)
    assert v_out.shape == (batch, nodes, vdim, 3)
    assert jnp.allclose(a_out, a_ref, atol=1e-4, rtol=1e-4)
    assert jnp.allclose(v_out, v_ref, atol=1e-4, rtol=1e-4)

    print("KERNEL_OK")
</pallas_src>

<mosaic_0001>
module attributes {stable_mosaic.version = 11 : i64} {
  func.func @edge_embed_kernel(%arg0: i32, %arg1: memref<1x8x3xf32, #tpu.memory_space<vmem>>, %arg2: memref<1x8x3xf32, #tpu.memory_space<vmem>>, %arg3: memref<4x32xf32, #tpu.memory_space<vmem>>, %arg4: memref<4x32xf32, #tpu.memory_space<vmem>>, %arg5: memref<1x32xf32, #tpu.memory_space<vmem>>, %arg6: memref<32x32xf32, #tpu.memory_space<vmem>>, %arg7: memref<1x32xf32, #tpu.memory_space<vmem>>, %arg8: memref<128x32xf32, #tpu.memory_space<vmem>>, %arg9: memref<1x32xf32, #tpu.memory_space<vmem>>, %arg10: memref<128x32xf32, #tpu.memory_space<vmem>>, %arg11: memref<1x8x128xf32, #tpu.memory_space<vmem>>, %arg12: memref<8x128xf32, #tpu.memory_space<vmem>>, %arg13: memref<24x128xf32, #tpu.memory_space<vmem>>) attributes {dimension_semantics = [#tpu.dimension_semantics<parallel>], iteration_bounds = array<i64: 2>, scalar_prefetch = 0 : i64, scratch_operands = 2 : i64, tpu.core_type = #tpu.core_type<tc>, window_params = [{transform_indices = @transform_0, window_bounds = array<i64: 1, 8, 3>}, {transform_indices = @transform_1, window_bounds = array<i64: 1, 8, 3>}, {pipeline_mode = #tpu.pipeline_mode<synchronous>, transform_indices = @transform_2, window_bounds = array<i64: 4, 32>}, {pipeline_mode = #tpu.pipeline_mode<synchronous>, transform_indices = @transform_3, window_bounds = array<i64: 4, 32>}, {pipeline_mode = #tpu.pipeline_mode<synchronous>, transform_indices = @transform_4, window_bounds = array<i64: 1, 32>}, {pipeline_mode = #tpu.pipeline_mode<synchronous>, transform_indices = @transform_5, window_bounds = array<i64: 32, 32>}, {pipeline_mode = #tpu.pipeline_mode<synchronous>, transform_indices = @transform_6, window_bounds = array<i64: 1, 32>}, {pipeline_mode = #tpu.pipeline_mode<synchronous>, transform_indices = @transform_7, window_bounds = array<i64: 128, 32>}, {pipeline_mode = #tpu.pipeline_mode<synchronous>, transform_indices = @transform_8, window_bounds = array<i64: 1, 32>}, {pipeline_mode = #tpu.pipeline_mode<synchronous>, transform_indices = @transform_9, window_bounds = array<i64: 128, 32>}, {transform_indices = @transform_10, window_bounds = array<i64: 1, 8, 128>}]} {
    %c0 = arith.constant 0 : index
    %c0_0 = arith.constant 0 : index
    %c0_1 = arith.constant 0 : index
    %0 = vector.load %arg1[%c0, %c0_0, %c0_1] : memref<1x8x3xf32, #tpu.memory_space<vmem>>, vector<1x8x3xf32>
    %1 = vector.shape_cast %0 : vector<1x8x3xf32> to vector<8x3xf32>
    %c0_2 = arith.constant 0 : index
    %c0_3 = arith.constant 0 : index
    %c0_4 = arith.constant 0 : index
    %2 = vector.load %arg2[%c0_2, %c0_3, %c0_4] : memref<1x8x3xf32, #tpu.memory_space<vmem>>, vector<1x8x3xf32>
    %3 = vector.shape_cast %2 : vector<1x8x3xf32> to vector<8x3xf32>
    %4 = vector.extract_strided_slice %1 {offsets = [1, 0], sizes = [7, 3], strides = [1, 1]} : vector<8x3xf32> to vector<7x3xf32>
    %5 = vector.extract_strided_slice %1 {offsets = [0, 0], sizes = [7, 3], strides = [1, 1]} : vector<8x3xf32> to vector<7x3xf32>
    %6 = arith.subf %4, %5 : vector<7x3xf32>
    %7 = vector.extract_strided_slice %3 {offsets = [1, 0], sizes = [7, 3], strides = [1, 1]} : vector<8x3xf32> to vector<7x3xf32>
    %8 = vector.extract_strided_slice %3 {offsets = [0, 0], sizes = [7, 3], strides = [1, 1]} : vector<8x3xf32> to vector<7x3xf32>
    %9 = arith.subf %7, %8 : vector<7x3xf32>
    %10 = vector.extract_strided_slice %3 {offsets = [0, 0], sizes = [7, 3], strides = [1, 1]} : vector<8x3xf32> to vector<7x3xf32>
    %11 = vector.extract_strided_slice %1 {offsets = [1, 0], sizes = [7, 3], strides = [1, 1]} : vector<8x3xf32> to vector<7x3xf32>
    %12 = arith.subf %10, %11 : vector<7x3xf32>
    %13 = vector.extract_strided_slice %3 {offsets = [1, 0], sizes = [7, 3], strides = [1, 1]} : vector<8x3xf32> to vector<7x3xf32>
    %14 = vector.extract_strided_slice %1 {offsets = [0, 0], sizes = [7, 3], strides = [1, 1]} : vector<8x3xf32> to vector<7x3xf32>
    %15 = arith.subf %13, %14 : vector<7x3xf32>
    %c0_5 = arith.constant 0 : index
    %c0_6 = arith.constant 0 : index
    %16 = vector.load %arg4[%c0_5, %c0_6] : memref<4x32xf32, #tpu.memory_space<vmem>>, vector<4x32xf32>
    %cst = arith.constant 0.000000e+00 : f32
    %17 = vector.broadcast %cst : f32 to vector<7x32xf32>
    %c0_7 = arith.constant 0 : index
    %c0_8 = arith.constant 0 : index
    %18 = vector.load %arg5[%c0_7, %c0_8] : memref<1x32xf32, #tpu.memory_space<vmem>>, vector<1x32xf32>
    %19 = vector.broadcast %18 : vector<1x32xf32> to vector<7x32xf32>
    %20 = arith.addf %17, %19 : vector<7x32xf32>
    %21 = arith.mulf %6, %6 : vector<7x3xf32>
    %cst_9 = arith.constant dense<0.000000e+00> : vector<7xf32>
    %22 = vector.multi_reduction <add>, %21, %cst_9 [1] : vector<7x3xf32> to vector<7xf32>
    %23 = vector.shape_cast %22 : vector<7xf32> to vector<7x1xf32>
    %24 = math.sqrt %23 : vector<7x1xf32>
    %25 = vector.extract_strided_slice %16 {offsets = [0, 0], sizes = [1, 32], strides = [1, 1]} : vector<4x32xf32> to vector<1x32xf32>
    %26 = vector.broadcast %24 : vector<7x1xf32> to vector<7x32xf32>
    %27 = vector.broadcast %25 : vector<1x32xf32> to vector<7x32xf32>
    %28 = arith.mulf %26, %27 : vector<7x32xf32>
    %29 = arith.addf %20, %28 : vector<7x32xf32>
    %30 = arith.mulf %9, %9 : vector<7x3xf32>
    %cst_10 = arith.constant dense<0.000000e+00> : vector<7xf32>
    %31 = vector.multi_reduction <add>, %30, %cst_10 [1] : vector<7x3xf32> to vector<7xf32>
    %32 = vector.shape_cast %31 : vector<7xf32> to vector<7x1xf32>
    %33 = math.sqrt %32 : vector<7x1xf32>
    %34 = vector.extract_strided_slice %16 {offsets = [1, 0], sizes = [1, 32], strides = [1, 1]} : vector<4x32xf32> to vector<1x32xf32>
    %35 = vector.broadcast %33 : vector<7x1xf32> to vector<7x32xf32>
    %36 = vector.broadcast %34 : vector<1x32xf32> to vector<7x32xf32>
    %37 = arith.mulf %35, %36 : vector<7x32xf32>
    %38 = arith.addf %29, %37 : vector<7x32xf32>
    %39 = arith.mulf %12, %12 : vector<7x3xf32>
    %cst_11 = arith.constant dense<0.000000e+00> : vector<7xf32>
    %40 = vector.multi_reduction <add>, %39, %cst_11 [1] : vector<7x3xf32> to vector<7xf32>
    %41 = vector.shape_cast %40 : vector<7xf32> to vector<7x1xf32>
    %42 = math.sqrt %41 : vector<7x1xf32>
    %43 = vector.extract_strided_slice %16 {offsets = [2, 0], sizes = [1, 32], strides = [1, 1]} : vector<4x32xf32> to vector<1x32xf32>
    %44 = vector.broadcast %42 : vector<7x1xf32> to vector<7x32xf32>
    %45 = vector.broadcast %43 : vector<1x32xf32> to vector<7x32xf32>
    %46 = arith.mulf %44, %45 : vector<7x32xf32>
    %47 = arith.addf %38, %46 : vector<7x32xf32>
    %48 = arith.mulf %15, %15 : vector<7x3xf32>
    %cst_12 = arith.constant dense<0.000000e+00> : vector<7xf32>
    %49 = vector.multi_reduction <add>, %48, %cst_12 [1] : vector<7x3xf32> to vector<7xf32>
    %50 = vector.shape_cast %49 : vector<7xf32> to vector<7x1xf32>
    %51 = math.sqrt %50 : vector<7x1xf32>
    %52 = vector.extract_strided_slice %16 {offsets = [3, 0], sizes = [1, 32], strides = [1, 1]} : vector<4x32xf32> to vector<1x32xf32>
    %53 = vector.broadcast %51 : vector<7x1xf32> to vector<7x32xf32>
    %54 = vector.broadcast %52 : vector<1x32xf32> to vector<7x32xf32>
    %55 = arith.mulf %53, %54 : vector<7x32xf32>
    %56 = arith.addf %47, %55 : vector<7x32xf32>
    %cst_13 = arith.constant 0.000000e+00 : f32
    %57 = vector.broadcast %cst_13 : f32 to vector<7x32xf32>
    %58 = arith.cmpf ogt, %56, %57 : vector<7x32xf32>
    %cst_14 = arith.constant 2.000000e-01 : f32
    %59 = vector.broadcast %cst_14 : f32 to vector<7x32xf32>
    %60 = arith.mulf %59, %56 : vector<7x32xf32>
    %61 = arith.select %58, %56, %60 : vector<7x32xi1>, vector<7x32xf32>
    %c0_15 = arith.constant 0 : index
    %c0_16 = arith.constant 0 : index
    %62 = vector.load %arg6[%c0_15, %c0_16] : memref<32x32xf32, #tpu.memory_space<vmem>>, vector<32x32xf32>
    %cst_17 = arith.constant dense<0.000000e+00> : vector<7x32xf32>
    %63 = tpu.matmul %61, %62, %cst_17 {dimension_numbers = #tpu.dot_dimension_numbers<[1], [0], [0], [1], [0, 0, 1, 1], [], []>} : vector<7x32xf32>, vector<32x32xf32>, vector<7x32xf32> -> vector<7x32xf32>
    %c0_18 = arith.constant 0 : index
    %c0_19 = arith.constant 0 : index
    %64 = vector.load %arg7[%c0_18, %c0_19] : memref<1x32xf32, #tpu.memory_space<vmem>>, vector<1x32xf32>
    %65 = vector.broadcast %64 : vector<1x32xf32> to vector<7x32xf32>
    %66 = arith.addf %63, %65 : vector<7x32xf32>
    %cst_20 = arith.constant 0.000000e+00 : f32
    %67 = vector.broadcast %cst_20 : f32 to vector<1x32xf32>
    %cst_21 = arith.constant 0.000000e+00 : f32
    %68 = vector.broadcast %cst_21 : f32 to vector<2x32xf32>
    %c0_22 = arith.constant 0 : index
    %c0_23 = arith.constant 0 : index
    %69 = vector.load %arg12[%c0_22, %c0_23] : memref<8x128xf32, #tpu.memory_space<vmem>>, vector<2x32xf32>
    tpu.vector_store %arg12[%c0_22, %c0_23], %68 {strides = array<i32>} : memref<8x128xf32, #tpu.memory_space<vmem>>, vector<2x32xf32>,
    %70 = vector.extract_strided_slice %66 {offsets = [0, 0], sizes = [6, 32], strides = [1, 1]} : vector<7x32xf32> to vector<6x32xf32>
    %c2 = arith.constant 2 : index
    %c0_24 = arith.constant 0 : index
    %71 = vector.load %arg12[%c2, %c0_24] : memref<8x128xf32, #tpu.memory_space<vmem>>, vector<6x32xf32>
    tpu.vector_store %arg12[%c2, %c0_24], %70 {strides = array<i32>} : memref<8x128xf32, #tpu.memory_space<vmem>>, vector<6x32xf32>,
    %c0_25 = arith.constant 0 : index
    %c32 = arith.constant 32 : index
    %72 = vector.load %arg12[%c0_25, %c32] : memref<8x128xf32, #tpu.memory_space<vmem>>, vector<1x32xf32>
    tpu.vector_store %arg12[%c0_25, %c32], %67 {strides = array<i32>} : memref<8x128xf32, #tpu.memory_space<vmem>>, vector<1x32xf32>,
    %c1 = arith.constant 1 : index
    %c32_26 = arith.constant 32 : index
    %73 = vector.load %arg12[%c1, %c32_26] : memref<8x128xf32, #tpu.memory_space<vmem>>, vector<7x32xf32>
    tpu.vector_store %arg12[%c1, %c32_26], %66 {strides = array<i32>} : memref<8x128xf32, #tpu.memory_space<vmem>>, vector<7x32xf32>,
    %c0_27 = arith.constant 0 : index
    %c64 = arith.constant 64 : index
    %74 = vector.load %arg12[%c0_27, %c64] : memref<8x128xf32, #tpu.memory_space<vmem>>, vector<7x32xf32>
    tpu.vector_store %arg12[%c0_27, %c64], %66 {strides = array<i32>} : memref<8x128xf32, #tpu.memory_space<vmem>>, vector<7x32xf32>,
    %c7 = arith.constant 7 : index
    %c64_28 = arith.constant 64 : index
    %75 = vector.load %arg12[%c7, %c64_28] : memref<8x128xf32, #tpu.memory_space<vmem>>, vector<1x32xf32>
    tpu.vector_store %arg12[%c7, %c64_28], %67 {strides = array<i32>} : memref<8x128xf32, #tpu.memory_space<vmem>>, vector<1x32xf32>,
    %76 = vector.extract_strided_slice %66 {offsets = [1, 0], sizes = [6, 32], strides = [1, 1]} : vector<7x32xf32> to vector<6x32xf32>
    %c0_29 = arith.constant 0 : index
    %c96 = arith.constant 96 : index
    %77 = vector.load %arg12[%c0_29, %c96] : memref<8x128xf32, #tpu.memory_space<vmem>>, vector<6x32xf32>
    tpu.vector_store %arg12[%c0_29, %c96], %76 {strides = array<i32>} : memref<8x128xf32, #tpu.memory_space<vmem>>, vector<6x32xf32>,
    %c6 = arith.constant 6 : index
    %c96_30 = arith.constant 96 : index
    %78 = vector.load %arg12[%c6, %c96_30] : memref<8x128xf32, #tpu.memory_space<vmem>>, vector<2x32xf32>
    tpu.vector_store %arg12[%c6, %c96_30], %68 {strides = array<i32>} : memref<8x128xf32, #tpu.memory_space<vmem>>, vector<2x32xf32>,
    %c0_31 = arith.constant 0 : index
    %c0_32 = arith.constant 0 : index
    %79 = vector.load %arg12[%c0_31, %c0_32] : memref<8x128xf32, #tpu.memory_space<vmem>>, vector<8x128xf32>
    %c0_33 = arith.constant 0 : index
    %c0_34 = arith.constant 0 : index
    %80 = vector.load %arg8[%c0_33, %c0_34] : memref<128x32xf32, #tpu.memory_space<vmem>>, vector<128x32xf32>
    %cst_35 = arith.constant dense<0.000000e+00> : vector<8x32xf32>
    %81 = tpu.matmul %79, %80, %cst_35 {dimension_numbers = #tpu.dot_dimension_numbers<[1], [0], [0], [1], [0, 0, 1, 1], [], []>} : vector<8x128xf32>, vector<128x32xf32>, vector<8x32xf32> -> vector<8x32xf32>
    %c0_36 = arith.constant 0 : index
    %c0_37 = arith.constant 0 : index
    %82 = vector.load %arg9[%c0_36, %c0_37] : memref<1x32xf32, #tpu.memory_space<vmem>>, vector<1x32xf32>
    %83 = vector.broadcast %82 : vector<1x32xf32> to vector<8x32xf32>
    %84 = arith.addf %81, %83 : vector<8x32xf32>
    %c0_38 = arith.constant 0 : index
    %c0_39 = arith.constant 0 : index
    %c0_40 = arith.constant 0 : index
    %85 = vector.load %arg11[%c0_38, %c0_39, %c0_40] : memref<1x8x128xf32, #tpu.memory_space<vmem>>, vector<1x8x32xf32>
    %86 = vector.shape_cast %85 : vector<1x8x32xf32> to vector<8x32xf32>
    %87 = vector.shape_cast %84 : vector<8x32xf32> to vector<1x8x32xf32>
    tpu.vector_store %arg11[%c0_38, %c0_39, %c0_40], %87 {strides = array<i32>} : memref<1x8x128xf32, #tpu.memory_space<vmem>>, vector<1x8x32xf32>,
    %c0_41 = arith.constant 0 : index
    %c0_42 = arith.constant 0 : index
    %88 = vector.load %arg3[%c0_41, %c0_42] : memref<4x32xf32, #tpu.memory_space<vmem>>, vector<4x32xf32>
    %cst_43 = arith.constant 0.000000e+00 : f32
    %89 = vector.broadcast %cst_43 : f32 to vector<7x32xf32>
    %90 = vector.extract_strided_slice %6 {offsets = [0, 0], sizes = [7, 1], strides = [1, 1]} : vector<7x3xf32> to vector<7x1xf32>
    %91 = vector.extract_strided_slice %88 {offsets = [0, 0], sizes = [1, 32], strides = [1, 1]} : vector<4x32xf32> to vector<1x32xf32>
    %92 = vector.broadcast %90 : vector<7x1xf32> to vector<7x32xf32>
    %93 = vector.broadcast %91 : vector<1x32xf32> to vector<7x32xf32>
    %94 = arith.mulf %92, %93 : vector<7x32xf32>
    %95 = arith.addf %89, %94 : vector<7x32xf32>
    %96 = vector.extract_strided_slice %9 {offsets = [0, 0], sizes = [7, 1], strides = [1, 1]} : vector<7x3xf32> to vector<7x1xf32>
    %97 = vector.extract_strided_slice %88 {offsets = [1, 0], sizes = [1, 32], strides = [1, 1]} : vector<4x32xf32> to vector<1x32xf32>
    %98 = vector.broadcast %96 : vector<7x1xf32> to vector<7x32xf32>
    %99 = vector.broadcast %97 : vector<1x32xf32> to vector<7x32xf32>
    %100 = arith.mulf %98, %99 : vector<7x32xf32>
    %101 = arith.addf %95, %100 : vector<7x32xf32>
    %102 = vector.extract_strided_slice %12 {offsets = [0, 0], sizes = [7, 1], strides = [1, 1]} : vector<7x3xf32> to vector<7x1xf32>
    %103 = vector.extract_strided_slice %88 {offsets = [2, 0], sizes = [1, 32], strides = [1, 1]} : vector<4x32xf32> to vector<1x32xf32>
    %104 = vector.broadcast %102 : vector<7x1xf32> to vector<7x32xf32>
    %105 = vector.broadcast %103 : vector<1x32xf32> to vector<7x32xf32>
    %106 = arith.mulf %104, %105 : vector<7x32xf32>
    %107 = arith.addf %101, %106 : vector<7x32xf32>
    %108 = vector.extract_strided_slice %15 {offsets = [0, 0], sizes = [7, 1], strides = [1, 1]} : vector<7x3xf32> to vector<7x1xf32>
    %109 = vector.extract_strided_slice %88 {offsets = [3, 0], sizes = [1, 32], strides = [1, 1]} : vector<4x32xf32> to vector<1x32xf32>
    %110 = vector.broadcast %108 : vector<7x1xf32> to vector<7x32xf32>
    %111 = vector.broadcast %109 : vector<1x32xf32> to vector<7x32xf32>
    %112 = arith.mulf %110, %111 : vector<7x32xf32>
    %113 = arith.addf %107, %112 : vector<7x32xf32>
    %cst_44 = arith.constant 0.000000e+00 : f32
    %114 = vector.broadcast %cst_44 : f32 to vector<1x32xf32>
    %cst_45 = arith.constant 0.000000e+00 : f32
    %115 = vector.broadcast %cst_45 : f32 to vector<2x32xf32>
    %c0_46 = arith.constant 0 : index
    %c0_47 = arith.constant 0 : index
    %116 = vector.load %arg13[%c0_46, %c0_47] : memref<24x128xf32, #tpu.memory_space<vmem>>, vector<2x32xf32>
    tpu.vector_store %arg13[%c0_46, %c0_47], %115 {strides = array<i32>} : memref<24x128xf32, #tpu.memory_space<vmem>>, vector<2x32xf32>,
    %117 = vector.extract_strided_slice %113 {offsets = [0, 0], sizes = [6, 32], strides = [1, 1]} : vector<7x32xf32> to vector<6x32xf32>
    %c2_48 = arith.constant 2 : index
    %c0_49 = arith.constant 0 : index
    %118 = vector.load %arg13[%c2_48, %c0_49] : memref<24x128xf32, #tpu.memory_space<vmem>>, vector<6x32xf32>
    tpu.vector_store %arg13[%c2_48, %c0_49], %117 {strides = array<i32>} : memref<24x128xf32, #tpu.memory_space<vmem>>, vector<6x32xf32>,
    %c0_50 = arith.constant 0 : index
    %c32_51 = arith.constant 32 : index
    %119 = vector.load %arg13[%c0_50, %c32_51] : memref<24x128xf32, #tpu.memory_space<vmem>>, vector<1x32xf32>
    tpu.vector_store %arg13[%c0_50, %c32_51], %114 {strides = array<i32>} : memref<24x128xf32, #tpu.memory_space<vmem>>, vector<1x32xf32>,
    %c1_52 = arith.constant 1 : index
    %c32_53 = arith.constant 32 : index
    %120 = vector.load %arg13[%c1_52, %c32_53] : memref<24x128xf32, #tpu.memory_space<vmem>>, vector<7x32xf32>
    tpu.vector_store %arg13[%c1_52, %c32_53], %113 {strides = array<i32>} : memref<24x128xf32, #tpu.memory_space<vmem>>, vector<7x32xf32>,
    %c0_54 = arith.constant 0 : index
    %c64_55 = arith.constant 64 : index
    %121 = vector.load %arg13[%c0_54, %c64_55] : memref<24x128xf32, #tpu.memory_space<vmem>>, vector<7x32xf32>
    tpu.vector_store %arg13[%c0_54, %c64_55], %113 {strides = array<i32>} : memref<24x128xf32, #tpu.memory_space<vmem>>, vector<7x32xf32>,
    %c7_56 = arith.constant 7 : index
    %c64_57 = arith.constant 64 : index
    %122 = vector.load %arg13[%c7_56, %c64_57] : memref<24x128xf32, #tpu.memory_space<vmem>>, vector<1x32xf32>
    tpu.vector_store %arg13[%c7_56, %c64_57], %114 {strides = array<i32>} : memref<24x128xf32, #tpu.memory_space<vmem>>, vector<1x32xf32>,
    %123 = vector.extract_strided_slice %113 {offsets = [1, 0], sizes = [6, 32], strides = [1, 1]} : vector<7x32xf32> to vector<6x32xf32>
    %c0_58 = arith.constant 0 : index
    %c96_59 = arith.constant 96 : index
    %124 = vector.load %arg13[%c0_58, %c96_59] : memref<24x128xf32, #tpu.memory_space<vmem>>, vector<6x32xf32>
    tpu.vector_store %arg13[%c0_58, %c96_59], %123 {strides = array<i32>} : memref<24x128xf32, #tpu.memory_space<vmem>>, vector<6x32xf32>,
    %c6_60 = arith.constant 6 : index
    %c96_61 = arith.constant 96 : index
    %125 = vector.load %arg13[%c6_60, %c96_61] : memref<24x128xf32, #tpu.memory_space<vmem>>, vector<2x32xf32>
    tpu.vector_store %arg13[%c6_60, %c96_61], %115 {strides = array<i32>} : memref<24x128xf32, #tpu.memory_space<vmem>>, vector<2x32xf32>,
    %cst_62 = arith.constant 0.000000e+00 : f32
    %126 = vector.broadcast %cst_62 : f32 to vector<7x32xf32>
    %127 = vector.extract_strided_slice %6 {offsets = [0, 1], sizes = [7, 1], strides = [1, 1]} : vector<7x3xf32> to vector<7x1xf32>
    %128 = vector.extract_strided_slice %88 {offsets = [0, 0], sizes = [1, 32], strides = [1, 1]} : vector<4x32xf32> to vector<1x32xf32>
    %129 = vector.broadcast %127 : vector<7x1xf32> to vector<7x32xf32>
    %130 = vector.broadcast %128 : vector<1x32xf32> to vector<7x32xf32>
    %131 = arith.mulf %129, %130 : vector<7x32xf32>
    %132 = arith.addf %126, %131 : vector<7x32xf32>
    %133 = vector.extract_strided_slice %9 {offsets = [0, 1], sizes = [7, 1], strides = [1, 1]} : vector<7x3xf32> to vector<7x1xf32>
    %134 = vector.extract_strided_slice %88 {offsets = [1, 0], sizes = [1, 32], strides = [1, 1]} : vector<4x32xf32> to vector<1x32xf32>
    %135 = vector.broadcast %133 : vector<7x1xf32> to vector<7x32xf32>
    %136 = vector.broadcast %134 : vector<1x32xf32> to vector<7x32xf32>
    %137 = arith.mulf %135, %136 : vector<7x32xf32>
    %138 = arith.addf %132, %137 : vector<7x32xf32>
    %139 = vector.extract_strided_slice %12 {offsets = [0, 1], sizes = [7, 1], strides = [1, 1]} : vector<7x3xf32> to vector<7x1xf32>
    %140 = vector.extract_strided_slice %88 {offsets = [2, 0], sizes = [1, 32], strides = [1, 1]} : vector<4x32xf32> to vector<1x32xf32>
    %141 = vector.broadcast %139 : vector<7x1xf32> to vector<7x32xf32>
    %142 = vector.broadcast %140 : vector<1x32xf32> to vector<7x32xf32>
    %143 = arith.mulf %141, %142 : vector<7x32xf32>
    %144 = arith.addf %138, %143 : vector<7x32xf32>
    %145 = vector.extract_strided_slice %15 {offsets = [0, 1], sizes = [7, 1], strides = [1, 1]} : vector<7x3xf32> to vector<7x1xf32>
    %146 = vector.extract_strided_slice %88 {offsets = [3, 0], sizes = [1, 32], strides = [1, 1]} : vector<4x32xf32> to vector<1x32xf32>
    %147 = vector.broadcast %145 : vector<7x1xf32> to vector<7x32xf32>
    %148 = vector.broadcast %146 : vector<1x32xf32> to vector<7x32xf32>
    %149 = arith.mulf %147, %148 : vector<7x32xf32>
    %150 = arith.addf %144, %149 : vector<7x32xf32>
    %cst_63 = arith.constant 0.000000e+00 : f32
    %151 = vector.broadcast %cst_63 : f32 to vector<1x32xf32>
    %cst_64 = arith.constant 0.000000e+00 : f32
    %152 = vector.broadcast %cst_64 : f32 to vector<2x32xf32>
    %c8 = arith.constant 8 : index
    %c0_65 = arith.constant 0 : index
    %153 = vector.load %arg13[%c8, %c0_65] : memref<24x128xf32, #tpu.memory_space<vmem>>, vector<2x32xf32>
    tpu.vector_store %arg13[%c8, %c0_65], %152 {strides = array<i32>} : memref<24x128xf32, #tpu.memory_space<vmem>>, vector<2x32xf32>,
    %154 = vector.extract_strided_slice %150 {offsets = [0, 0], sizes = [6, 32], strides = [1, 1]} : vector<7x32xf32> to vector<6x32xf32>
    %c10 = arith.constant 10 : index
    %c0_66 = arith.constant 0 : index
    %155 = vector.load %arg13[%c10, %c0_66] : memref<24x128xf32, #tpu.memory_space<vmem>>, vector<6x32xf32>
    tpu.vector_store %arg13[%c10, %c0_66], %154 {strides = array<i32>} : memref<24x128xf32, #tpu.memory_space<vmem>>, vector<6x32xf32>,
    %c8_67 = arith.constant 8 : index
    %c32_68 = arith.constant 32 : index
    %156 = vector.load %arg13[%c8_67, %c32_68] : memref<24x128xf32, #tpu.memory_space<vmem>>, vector<1x32xf32>
    tpu.vector_store %arg13[%c8_67, %c32_68], %151 {strides = array<i32>} : memref<24x128xf32, #tpu.memory_space<vmem>>, vector<1x32xf32>,
    %c9 = arith.constant 9 : index
    %c32_69 = arith.constant 32 : index
    %157 = vector.load %arg13[%c9, %c32_69] : memref<24x128xf32, #tpu.memory_space<vmem>>, vector<7x32xf32>
    tpu.vector_store %arg13[%c9, %c32_69], %150 {strides = array<i32>} : memref<24x128xf32, #tpu.memory_space<vmem>>, vector<7x32xf32>,
    %c8_70 = arith.constant 8 : index
    %c64_71 = arith.constant 64 : index
    %158 = vector.load %arg13[%c8_70, %c64_71] : memref<24x128xf32, #tpu.memory_space<vmem>>, vector<7x32xf32>
    tpu.vector_store %arg13[%c8_70, %c64_71], %150 {strides = array<i32>} : memref<24x128xf32, #tpu.memory_space<vmem>>, vector<7x32xf32>,
    %c15 = arith.constant 15 : index
    %c64_72 = arith.constant 64 : index
    %159 = vector.load %arg13[%c15, %c64_72] : memref<24x128xf32, #tpu.memory_space<vmem>>, vector<1x32xf32>
    tpu.vector_store %arg13[%c15, %c64_72], %151 {strides = array<i32>} : memref<24x128xf32, #tpu.memory_space<vmem>>, vector<1x32xf32>,
    %160 = vector.extract_strided_slice %150 {offsets = [1, 0], sizes = [6, 32], strides = [1, 1]} : vector<7x32xf32> to vector<6x32xf32>
    %c8_73 = arith.constant 8 : index
    %c96_74 = arith.constant 96 : index
    %161 = vector.load %arg13[%c8_73, %c96_74] : memref<24x128xf32, #tpu.memory_space<vmem>>, vector<6x32xf32>
    tpu.vector_store %arg13[%c8_73, %c96_74], %160 {strides = array<i32>} : memref<24x128xf32, #tpu.memory_space<vmem>>, vector<6x32xf32>,
    %c14 = arith.constant 14 : index
    %c96_75 = arith.constant 96 : index
    %162 = vector.load %arg13[%c14, %c96_75] : memref<24x128xf32, #tpu.memory_space<vmem>>, vector<2x32xf32>
    tpu.vector_store %arg13[%c14, %c96_75], %152 {strides = array<i32>} : memref<24x128xf32, #tpu.memory_space<vmem>>, vector<2x32xf32>,
    %cst_76 = arith.constant 0.000000e+00 : f32
    %163 = vector.broadcast %cst_76 : f32 to vector<7x32xf32>
    %164 = vector.extract_strided_slice %6 {offsets = [0, 2], sizes = [7, 1], strides = [1, 1]} : vector<7x3xf32> to vector<7x1xf32>
    %165 = vector.extract_strided_slice %88 {offsets = [0, 0], sizes = [1, 32], strides = [1, 1]} : vector<4x32xf32> to vector<1x32xf32>
    %166 = vector.broadcast %164 : vector<7x1xf32> to vector<7x32xf32>
    %167 = vector.broadcast %165 : vector<1x32xf32> to vector<7x32xf32>
    %168 = arith.mulf %166, %167 : vector<7x32xf32>
    %169 = arith.addf %163, %168 : vector<7x32xf32>
    %170 = vector.extract_strided_slice %9 {offsets = [0, 2], sizes = [7, 1], strides = [1, 1]} : vector<7x3xf32> to vector<7x1xf32>
    %171 = vector.extract_strided_slice %88 {offsets = [1, 0], sizes = [1, 32], strides = [1, 1]} : vector<4x32xf32> to vector<1x32xf32>
    %172 = vector.broadcast %170 : vector<7x1xf32> to vector<7x32xf32>
    %173 = vector.broadcast %171 : vector<1x32xf32> to vector<7x32xf32>
    %174 = arith.mulf %172, %173 : vector<7x32xf32>
    %175 = arith.addf %169, %174 : vector<7x32xf32>
    %176 = vector.extract_strided_slice %12 {offsets = [0, 2], sizes = [7, 1], strides = [1, 1]} : vector<7x3xf32> to vector<7x1xf32>
    %177 = vector.extract_strided_slice %88 {offsets = [2, 0], sizes = [1, 32], strides = [1, 1]} : vector<4x32xf32> to vector<1x32xf32>
    %178 = vector.broadcast %176 : vector<7x1xf32> to vector<7x32xf32>
    %179 = vector.broadcast %177 : vector<1x32xf32> to vector<7x32xf32>
    %180 = arith.mulf %178, %179 : vector<7x32xf32>
    %181 = arith.addf %175, %180 : vector<7x32xf32>
    %182 = vector.extract_strided_slice %15 {offsets = [0, 2], sizes = [7, 1], strides = [1, 1]} : vector<7x3xf32> to vector<7x1xf32>
    %183 = vector.extract_strided_slice %88 {offsets = [3, 0], sizes = [1, 32], strides = [1, 1]} : vector<4x32xf32> to vector<1x32xf32>
    %184 = vector.broadcast %182 : vector<7x1xf32> to vector<7x32xf32>
    %185 = vector.broadcast %183 : vector<1x32xf32> to vector<7x32xf32>
    %186 = arith.mulf %184, %185 : vector<7x32xf32>
    %187 = arith.addf %181, %186 : vector<7x32xf32>
    %cst_77 = arith.constant 0.000000e+00 : f32
    %188 = vector.broadcast %cst_77 : f32 to vector<1x32xf32>
    %cst_78 = arith.constant 0.000000e+00 : f32
    %189 = vector.broadcast %cst_78 : f32 to vector<2x32xf32>
    %c16 = arith.constant 16 : index
    %c0_79 = arith.constant 0 : index
    %190 = vector.load %arg13[%c16, %c0_79] : memref<24x128xf32, #tpu.memory_space<vmem>>, vector<2x32xf32>
    tpu.vector_store %arg13[%c16, %c0_79], %189 {strides = array<i32>} : memref<24x128xf32, #tpu.memory_space<vmem>>, vector<2x32xf32>,
    %191 = vector.extract_strided_slice %187 {offsets = [0, 0], sizes = [6, 32], strides = [1, 1]} : vector<7x32xf32> to vector<6x32xf32>
    %c18 = arith.constant 18 : index
    %c0_80 = arith.constant 0 : index
    %192 = vector.load %arg13[%c18, %c0_80] : memref<24x128xf32, #tpu.memory_space<vmem>>, vector<6x32xf32>
    tpu.vector_store %arg13[%c18, %c0_80], %191 {strides = array<i32>} : memref<24x128xf32, #tpu.memory_space<vmem>>, vector<6x32xf32>,
    %c16_81 = arith.constant 16 : index
    %c32_82 = arith.constant 32 : index
    %193 = vector.load %arg13[%c16_81, %c32_82] : memref<24x128xf32, #tpu.memory_space<vmem>>, vector<1x32xf32>
    tpu.vector_store %arg13[%c16_81, %c32_82], %188 {strides = array<i32>} : memref<24x128xf32, #tpu.memory_space<vmem>>, vector<1x32xf32>,
    %c17 = arith.constant 17 : index
    %c32_83 = arith.constant 32 : index
    %194 = vector.load %arg13[%c17, %c32_83] : memref<24x128xf32, #tpu.memory_space<vmem>>, vector<7x32xf32>
    tpu.vector_store %arg13[%c17, %c32_83], %187 {strides = array<i32>} : memref<24x128xf32, #tpu.memory_space<vmem>>, vector<7x32xf32>,
    %c16_84 = arith.constant 16 : index
    %c64_85 = arith.constant 64 : index
    %195 = vector.load %arg13[%c16_84, %c64_85] : memref<24x128xf32, #tpu.memory_space<vmem>>, vector<7x32xf32>
    tpu.vector_store %arg13[%c16_84, %c64_85], %187 {strides = array<i32>} : memref<24x128xf32, #tpu.memory_space<vmem>>, vector<7x32xf32>,
    %c23 = arith.constant 23 : index
    %c64_86 = arith.constant 64 : index
    %196 = vector.load %arg13[%c23, %c64_86] : memref<24x128xf32, #tpu.memory_space<vmem>>, vector<1x32xf32>
    tpu.vector_store %arg13[%c23, %c64_86], %188 {strides = array<i32>} : memref<24x128xf32, #tpu.memory_space<vmem>>, vector<1x32xf32>,
    %197 = vector.extract_strided_slice %187 {offsets = [1, 0], sizes = [6, 32], strides = [1, 1]} : vector<7x32xf32> to vector<6x32xf32>
    %c16_87 = arith.constant 16 : index
    %c96_88 = arith.constant 96 : index
    %198 = vector.load %arg13[%c16_87, %c96_88] : memref<24x128xf32, #tpu.memory_space<vmem>>, vector<6x32xf32>
    tpu.vector_store %arg13[%c16_87, %c96_88], %197 {strides = array<i32>} : memref<24x128xf32, #tpu.memory_space<vmem>>, vector<6x32xf32>,
    %c22 = arith.constant 22 : index
    %c96_89 = arith.constant 96 : index
    %199 = vector.load %arg13[%c22, %c96_89] : memref<24x128xf32, #tpu.memory_space<vmem>>, vector<2x32xf32>
    tpu.vector_store %arg13[%c22, %c96_89], %189 {strides = array<i32>} : memref<24x128xf32, #tpu.memory_space<vmem>>, vector<2x32xf32>,
    %c0_90 = arith.constant 0 : index
    %c0_91 = arith.constant 0 : index
    %200 = vector.load %arg13[%c0_90, %c0_91] : memref<24x128xf32, #tpu.memory_space<vmem>>, vector<24x128xf32>
    %c0_92 = arith.constant 0 : index
    %c0_93 = arith.constant 0 : index
    %201 = vector.load %arg10[%c0_92, %c0_93] : memref<128x32xf32, #tpu.memory_space<vmem>>, vector<128x32xf32>
    %cst_94 = arith.constant dense<0.000000e+00> : vector<24x32xf32>
    %202 = tpu.matmul %200, %201, %cst_94 {dimension_numbers = #tpu.dot_dimension_numbers<[1], [0], [0], [1], [0, 0, 1, 1], [], []>} : vector<24x128xf32>, vector<128x32xf32>, vector<24x32xf32> -> vector<24x32xf32>
    %203 = vector.extract_strided_slice %202 {offsets = [0, 0], sizes = [8, 32], strides = [1, 1]} : vector<24x32xf32> to vector<8x32xf32>
    %c0_95 = arith.constant 0 : index
    %c0_96 = arith.constant 0 : index
    %c32_97 = arith.constant 32 : index
    %204 = vector.load %arg11[%c0_95, %c0_96, %c32_97] : memref<1x8x128xf32, #tpu.memory_space<vmem>>, vector<1x8x32xf32>
    %205 = vector.shape_cast %204 : vector<1x8x32xf32> to vector<8x32xf32>
    %206 = vector.shape_cast %203 : vector<8x32xf32> to vector<1x8x32xf32>
    tpu.vector_store %arg11[%c0_95, %c0_96, %c32_97], %206 {strides = array<i32>} : memref<1x8x128xf32, #tpu.memory_space<vmem>>, vector<1x8x32xf32>,
    %207 = vector.extract_strided_slice %202 {offsets = [8, 0], sizes = [8, 32], strides = [1, 1]} : vector<24x32xf32> to vector<8x32xf32>
    %c0_98 = arith.constant 0 : index
    %c0_99 = arith.constant 0 : index
    %c64_100 = arith.constant 64 : index
    %208 = vector.load %arg11[%c0_98, %c0_99, %c64_100] : memref<1x8x128xf32, #tpu.memory_space<vmem>>, vector<1x8x32xf32>
    %209 = vector.shape_cast %208 : vector<1x8x32xf32> to vector<8x32xf32>
    %210 = vector.shape_cast %207 : vector<8x32xf32> to vector<1x8x32xf32>
    tpu.vector_store %arg11[%c0_98, %c0_99, %c64_100], %210 {strides = array<i32>} : memref<1x8x128xf32, #tpu.memory_space<vmem>>, vector<1x8x32xf32>,
    %211 = vector.extract_strided_slice %202 {offsets = [16, 0], sizes = [8, 32], strides = [1, 1]} : vector<24x32xf32> to vector<8x32xf32>
    %c0_101 = arith.constant 0 : index
    %c0_102 = arith.constant 0 : index
    %c96_103 = arith.constant 96 : index
    %212 = vector.load %arg11[%c0_101, %c0_102, %c96_103] : memref<1x8x128xf32, #tpu.memory_space<vmem>>, vector<1x8x32xf32>
    %213 = vector.shape_cast %212 : vector<1x8x32xf32> to vector<8x32xf32>
    %214 = vector.shape_cast %211 : vector<8x32xf32> to vector<1x8x32xf32>
    tpu.vector_store %arg11[%c0_101, %c0_102, %c96_103], %214 {strides = array<i32>} : memref<1x8x128xf32, #tpu.memory_space<vmem>>, vector<1x8x32xf32>,
    return
  }
  func.func @transform_0(%arg0: i32) -> (i32, i32, i32) {
    %c0_i32 = arith.constant 0 : i32
    %c0_i32_0 = arith.constant 0 : i32
    %c0_i32_1 = arith.constant 0 : i32
    return %arg0, %c0_i32, %c0_i32_0 : i32, i32, i32
  }
  func.func @transform_1(%arg0: i32) -> (i32, i32, i32) {
    %c0_i32 = arith.constant 0 : i32
    %c0_i32_0 = arith.constant 0 : i32
    %c0_i32_1 = arith.constant 0 : i32
    return %arg0, %c0_i32, %c0_i32_0 : i32, i32, i32
  }
  func.func @transform_2(%arg0: i32) -> (i32, i32) {
    %c0_i32 = arith.constant 0 : i32
    %c0_i32_0 = arith.constant 0 : i32
    %c0_i32_1 = arith.constant 0 : i32
    return %c0_i32, %c0_i32_0 : i32, i32
  }
  func.func @transform_3(%arg0: i32) -> (i32, i32) {
    %c0_i32 = arith.constant 0 : i32
    %c0_i32_0 = arith.constant 0 : i32
    %c0_i32_1 = arith.constant 0 : i32
    return %c0_i32, %c0_i32_0 : i32, i32
  }
  func.func @transform_4(%arg0: i32) -> (i32, i32) {
    %c0_i32 = arith.constant 0 : i32
    %c0_i32_0 = arith.constant 0 : i32
    %c0_i32_1 = arith.constant 0 : i32
    return %c0_i32, %c0_i32_0 : i32, i32
  }
  func.func @transform_5(%arg0: i32) -> (i32, i32) {
    %c0_i32 = arith.constant 0 : i32
    %c0_i32_0 = arith.constant 0 : i32
    %c0_i32_1 = arith.constant 0 : i32
    return %c0_i32, %c0_i32_0 : i32, i32
  }
  func.func @transform_6(%arg0: i32) -> (i32, i32) {
    %c0_i32 = arith.constant 0 : i32
    %c0_i32_0 = arith.constant 0 : i32
    %c0_i32_1 = arith.constant 0 : i32
    return %c0_i32, %c0_i32_0 : i32, i32
  }
  func.func @transform_7(%arg0: i32) -> (i32, i32) {
    %c0_i32 = arith.constant 0 : i32
    %c0_i32_0 = arith.constant 0 : i32
    %c0_i32_1 = arith.constant 0 : i32
    return %c0_i32, %c0_i32_0 : i32, i32
  }
  func.func @transform_8(%arg0: i32) -> (i32, i32) {
    %c0_i32 = arith.constant 0 : i32
    %c0_i32_0 = arith.constant 0 : i32
    %c0_i32_1 = arith.constant 0 : i32
    return %c0_i32, %c0_i32_0 : i32, i32
  }
  func.func @transform_9(%arg0: i32) -> (i32, i32) {
    %c0_i32 = arith.constant 0 : i32
    %c0_i32_0 = arith.constant 0 : i32
    %c0_i32_1 = arith.constant 0 : i32
    return %c0_i32, %c0_i32_0 : i32, i32
  }
  func.func @transform_10(%arg0: i32) -> (i32, i32, i32) {
    %c0_i32 = arith.constant 0 : i32
    %c0_i32_0 = arith.constant 0 : i32
    %c0_i32_1 = arith.constant 0 : i32
    return %arg0, %c0_i32, %c0_i32_0 : i32, i32, i32
  }
}

</mosaic_0001>

<llo_original>
// kernel: tpu_custom_call.1
$region0: #{tpu_custom_call.1}
  #allocation0 [shape = 'u32[]', space=smem, size = 0x4, offset = 0x4, fixed_abs, tag = 'smem constant byte address 0x4 - core index']
  #allocation1 [shape = 'u32[144,128]{1,0:T(1,128)}', space=vmem, size = 0x12000, scoped, tag = 'internal scratch']
  #allocation2 [shape = 'f32[8,128]{1,0:T(8,128)}', space=vmem, size = 0x1000, scoped, tag = 'scratch operand']
  #allocation3 [shape = 'f32[24,128]{1,0:T(8,128)}', space=vmem, size = 0x3000, scoped, tag = 'scratch operand']
  %s0 = inlined_call_operand.hbm [shape: f32[2,8,3], index: 0, kind: input, shape index: {}]
  %s1 = inlined_call_operand.hbm [shape: f32[2,8,3], index: 1, kind: input, shape index: {}]
  %s2 = inlined_call_operand.hbm [shape: f32[4,32], index: 2, kind: input, shape index: {}]
  %s3 = inlined_call_operand.hbm [shape: f32[4,32], index: 3, kind: input, shape index: {}]
  %s4 = inlined_call_operand.hbm [shape: f32[1,32], index: 4, kind: input, shape index: {}]
  %s5 = inlined_call_operand.hbm [shape: f32[32,32], index: 5, kind: input, shape index: {}]
  %s6 = inlined_call_operand.hbm [shape: f32[1,32], index: 6, kind: input, shape index: {}]
  %s7 = inlined_call_operand.hbm [shape: f32[128,32], index: 7, kind: input, shape index: {}]
  %s8 = inlined_call_operand.hbm [shape: f32[1,32], index: 8, kind: input, shape index: {}]
  %s9 = inlined_call_operand.hbm [shape: f32[128,32], index: 9, kind: input, shape index: {}]
  %s10 = inlined_call_operand.hbm [shape: f32[2,8,128], index: 10, kind: output, shape index: {}]
  %s11 = sld [smem:[#allocation0]]
  $region113: #{tpu_custom_call.1} parent=0
    _
  %s13 = ssub.s32 1, %s11
  %s14 = scalar_select 0, %s13, %s11
  $region1: #{tpu_custom_call.1} parent=0
    #allocation4 [shape = 'u8[8192]{0}', space=vmem, size = 0x2000, scoped, tag = 'input window, operand 0']
    #allocation5 [shape = 's32[2]{0}', space=sflag, size = 0x8, scoped, tag = 'scoped memory for tpu_custom_call.1']
    #allocation6 [shape = 's32[2]{0}', space=sflag, size = 0x8, scoped, tag = 'scoped memory for tpu_custom_call.1']
    #allocation7 [shape = 'u8[8192]{0}', space=vmem, size = 0x2000, scoped, tag = 'input window, operand 1']
    #allocation8 [shape = 's32[2]{0}', space=sflag, size = 0x8, scoped, tag = 'scoped memory for tpu_custom_call.1']
    #allocation9 [shape = 'u8[2048]{0}', space=vmem, size = 0x800, scoped, tag = 'input window, operand 2, single buffered']
    #allocation10 [shape = 'u8[2048]{0}', space=vmem, size = 0x800, scoped, tag = 'input window, operand 3, single buffered']
    #allocation11 [shape = 's32[1]{0}', space=sflag, size = 0x4, scoped, tag = 'scoped memory for tpu_custom_call.1']
    #allocation12 [shape = 'u8[512]{0}', space=vmem, size = 0x400, scoped, tag = 'input window, operand 4, single buffered']
    #allocation13 [shape = 'u8[16384]{0}', space=vmem, size = 0x4000, scoped, tag = 'input window, operand 5, single buffered']
    #allocation14 [shape = 's32[1]{0}', space=sflag, size = 0x4, scoped, tag = 'scoped memory for tpu_custom_call.1']
    #allocation15 [shape = 'u8[512]{0}', space=vmem, size = 0x400, scoped, tag = 'input window, operand 6, single buffered']
    #allocation16 [shape = 'u8[65536]{0}', space=vmem, size = 0x10000, scoped, tag = 'input window, operand 7, single buffered']
    #allocation17 [shape = 's32[1]{0}', space=sflag, size = 0x4, scoped, tag = 'scoped memory for tpu_custom_call.1']
    #allocation18 [shape = 'u8[512]{0}', space=vmem, size = 0x400, scoped, tag = 'input window, operand 8, single buffered']
    #allocation19 [shape = 'u8[65536]{0}', space=vmem, size = 0x10000, scoped, tag = 'input window, operand 9, single buffered']
    #allocation20 [shape = 's32[1]{0}', space=sflag, size = 0x4, scoped, tag = 'scoped memory for tpu_custom_call.1']
    #allocation21 [shape = 'u8[8192]{0}', space=vmem, size = 0x2000, scoped, tag = 'output window, operand 0']
    %15 = vsyncpa [#allocation5], 0
    %s16 = scalar_lea.sflag [#allocation5], 1
    %17 = vsyncpa %s16, 0
    %18 = vsyncpa [#allocation8], 0
    %s19 = scalar_lea.sflag [#allocation8], 1
    %20 = vsyncpa %s19, 0
    %21 = vsyncpa [#allocation11], 0
    %22 = vsyncpa [#allocation14], 0
    %23 = vsyncpa [#allocation17], 0
    %24 = vsyncpa [#allocation20], 0
    %25 = vsyncpa [#allocation6], 0
    %s26 = scalar_lea.sflag [#allocation6], 1
    %27 = vsyncpa %s26, 0
    loop: start=0, step=1, limit=4
    $region2: #{tpu_custom_call.1} parent=1 // loop_pre_header
      _
    $region3: #{tpu_custom_call.1} parent=1 // loop_header
      %s29 = sphi 0, %s33
      %p30 = scmp.ge.s32.totalorder %s29, 4
      %s39 = sphi 0, %s41
      %s42 = sphi 0, %s39
      %s43 = sphi 0, %s42
      %s59 = sphi 0, %s43
      %s65 = sphi 0, %s67
      %s68 = sphi 0, %s65
      %s69 = sphi 0, %s68
      %s85 = sphi 0, %s69
      %s89 = sphi 0, %s89
      %s91 = sphi 0, %s89
      %s92 = sphi 0, %s91
      %s106 = sphi 0, %s92
      %s110 = sphi 0, %s110
      %s112 = sphi 0, %s110
      %s113 = sphi 0, %s112
      %s127 = sphi 0, %s113
      %s131 = sphi 0, %s131
      %s133 = sphi 0, %s131
      %s134 = sphi 0, %s133
      %s148 = sphi 0, %s134
      %s152 = sphi 0, %s152
      %s154 = sphi 0, %s152
      %s155 = sphi 0, %s154
      %s169 = sphi 0, %s155
      %s173 = sphi 0, %s173
      %s175 = sphi 0, %s173
      %s176 = sphi 0, %s175
      %s190 = sphi 0, %s176
      %s194 = sphi 0, %s194
      %s196 = sphi 0, %s194
      %s197 = sphi 0, %s196
      %s211 = sphi 0, %s197
      %s215 = sphi 0, %s215
      %s217 = sphi 0, %s215
      %s218 = sphi 0, %s217
      %s232 = sphi 0, %s218
      %s236 = sphi 0, %s236
      %s238 = sphi 0, %s236
      %s239 = sphi 0, %s238
      %s253 = sphi 0, %s239
      %s259 = sphi 0, %s261
      %s262 = sphi 0, %s259
      %s263 = sphi 0, %s262
      %s279 = sphi 0, %s263
    $region4: #{tpu_custom_call.1} parent=1 // loop_header_branch
      %32 = sbr.rel (%p30) target = $region8
    $region5: #{tpu_custom_call.1} parent=1 // loop_body
      %s34 = ssub.s32 %s29, 1
      %s35 = ssub.s32 %s29, 2
      %s36 = sadd.s32 %s29, 1
      %s37 = ssub.s32 %s29, %s36
      %p38 = scmp.eq.s32.totalorder %s37, 0
      %s40 = sadd.s32 %s39, 1
      %s41 = scalar_select %p38, %s39, %s40
      %p44 = pneg %p38
      %p45 = scmp.eq.s32.totalorder %s29, 1
      %p46 = por %p44, %p45
      %p47 = scmp.ne.s32.totalorder %s39, %s42
      %p48 = scmp.eq.s32.totalorder %s29, 0
      %p49 = por %p47, %p48
      %p50 = scmp.ne.s32.totalorder %s39, %s42
      %p51 = scmp.eq.s32.totalorder %s34, 1
      %p52 = por %p50, %p51
      %p53 = scmp.ne.s32.totalorder %s42, %s43
      %p54 = scmp.eq.s32.totalorder %s34, 0
      %p55 = por %p53, %p54
      %p56 = scmp.ne.s32.totalorder %s42, %s43
      %p57 = scmp.eq.s32.totalorder %s35, 1
      %p58 = por %p56, %p57
      %p60 = scmp.ne.s32.totalorder %s43, %s59
      %p61 = scmp.eq.s32.totalorder %s35, 0
      %p62 = por %p60, %p61
      %s63 = ssub.s32 %s29, %s36
      %p64 = scmp.eq.s32.totalorder %s63, 0
      %s66 = sadd.s32 %s65, 1
      %s67 = scalar_select %p64, %s65, %s66
      %p70 = pneg %p64
      %p71 = scmp.eq.s32.totalorder %s29, 1
      %p72 = por %p70, %p71
      %p73 = scmp.ne.s32.totalorder %s65, %s68
      %p74 = scmp.eq.s32.totalorder %s29, 0
      %p75 = por %p73, %p74
      %p76 = scmp.ne.s32.totalorder %s65, %s68
      %p77 = scmp.eq.s32.totalorder %s34, 1
      %p78 = por %p76, %p77
      %p79 = scmp.ne.s32.totalorder %s68, %s69
      %p80 = scmp.eq.s32.totalorder %s34, 0
      %p81 = por %p79, %p80
      %p82 = scmp.ne.s32.totalorder %s68, %s69
      %p83 = scmp.eq.s32.totalorder %s35, 1
      %p84 = por %p82, %p83
      %p86 = scmp.ne.s32.totalorder %s69, %s85
      %p87 = scmp.eq.s32.totalorder %s35, 0
      %p88 = por %p86, %p87
      %s90 = sadd.s32 %s89, 1
      %p93 = scmp.eq.s32.totalorder %s29, 1
      %p94 = scmp.ne.s32.totalorder %s89, %s91
      %p95 = scmp.eq.s32.totalorder %s29, 0
      %p96 = por %p94, %p95
      %p97 = scmp.ne.s32.totalorder %s89, %s91
      %p98 = scmp.eq.s32.totalorder %s34, 1
      %p99 = por %p97, %p98
      %p100 = scmp.ne.s32.totalorder %s91, %s92
      %p101 = scmp.eq.s32.totalorder %s34, 0
      %p102 = por %p100, %p101
      %p103 = scmp.ne.s32.totalorder %s91, %s92
      %p104 = scmp.eq.s32.totalorder %s35, 1
      %p105 = por %p103, %p104
      %p107 = scmp.ne.s32.totalorder %s92, %s106
      %p108 = scmp.eq.s32.totalorder %s35, 0
      %p109 = por %p107, %p108
      %s111 = sadd.s32 %s110, 1
      %p114 = scmp.eq.s32.totalorder %s29, 1
      %p115 = scmp.ne.s32.totalorder %s110, %s112
      %p116 = scmp.eq.s32.totalorder %s29, 0
      %p117 = por %p115, %p116
      %p118 = scmp.ne.s32.totalorder %s110, %s112
      %p119 = scmp.eq.s32.totalorder %s34, 1
      %p120 = por %p118, %p119
      %p121 = scmp.ne.s32.totalorder %s112, %s113
      %p122 = scmp.eq.s32.totalorder %s34, 0
      %p123 = por %p121, %p122
      %p124 = scmp.ne.s32.totalorder %s112, %s113
      %p125 = scmp.eq.s32.totalorder %s35, 1
      %p126 = por %p124, %p125
      %p128 = scmp.ne.s32.totalorder %s113, %s127
      %p129 = scmp.eq.s32.totalorder %s35, 0
      %p130 = por %p128, %p129
      %s132 = sadd.s32 %s131, 1
      %p135 = scmp.eq.s32.totalorder %s29, 1
      %p136 = scmp.ne.s32.totalorder %s131, %s133
      %p137 = scmp.eq.s32.totalorder %s29, 0
      %p138 = por %p136, %p137
      %p139 = scmp.ne.s32.totalorder %s131, %s133
      %p140 = scmp.eq.s32.totalorder %s34, 1
      %p141 = por %p139, %p140
      %p142 = scmp.ne.s32.totalorder %s133, %s134
      %p143 = scmp.eq.s32.totalorder %s34, 0
      %p144 = por %p142, %p143
      %p145 = scmp.ne.s32.totalorder %s133, %s134
      %p146 = scmp.eq.s32.totalorder %s35, 1
      %p147 = por %p145, %p146
      %p149 = scmp.ne.s32.totalorder %s134, %s148
      %p150 = scmp.eq.s32.totalorder %s35, 0
      %p151 = por %p149, %p150
      %s153 = sadd.s32 %s152, 1
      %p156 = scmp.eq.s32.totalorder %s29, 1
      %p157 = scmp.ne.s32.totalorder %s152, %s154
      %p158 = scmp.eq.s32.totalorder %s29, 0
      %p159 = por %p157, %p158
      %p160 = scmp.ne.s32.totalorder %s152, %s154
      %p161 = scmp.eq.s32.totalorder %s34, 1
      %p162 = por %p160, %p161
      %p163 = scmp.ne.s32.totalorder %s154, %s155
      %p164 = scmp.eq.s32.totalorder %s34, 0
      %p165 = por %p163, %p164
      %p166 = scmp.ne.s32.totalorder %s154, %s155
      %p167 = scmp.eq.s32.totalorder %s35, 1
      %p168 = por %p166, %p167
      %p170 = scmp.ne.s32.totalorder %s155, %s169
      %p171 = scmp.eq.s32.totalorder %s35, 0
      %p172 = por %p170, %p171
      %s174 = sadd.s32 %s173, 1
      %p177 = scmp.eq.s32.totalorder %s29, 1
      %p178 = scmp.ne.s32.totalorder %s173, %s175
      %p179 = scmp.eq.s32.totalorder %s29, 0
      %p180 = por %p178, %p179
      %p181 = scmp.ne.s32.totalorder %s173, %s175
      %p182 = scmp.eq.s32.totalorder %s34, 1
      %p183 = por %p181, %p182
      %p184 = scmp.ne.s32.totalorder %s175, %s176
      %p185 = scmp.eq.s32.totalorder %s34, 0
      %p186 = por %p184, %p185
      %p187 = scmp.ne.s32.totalorder %s175, %s176
      %p188 = scmp.eq.s32.totalorder %s35, 1
      %p189 = por %p187, %p188
      %p191 = scmp.ne.s32.totalorder %s176, %s190
      %p192 = scmp.eq.s32.totalorder %s35, 0
      %p193 = por %p191, %p192
      %s195 = sadd.s32 %s194, 1
      %p198 = scmp.eq.s32.totalorder %s29, 1
      %p199 = scmp.ne.s32.totalorder %s194, %s196
      %p200 = scmp.eq.s32.totalorder %s29, 0
      %p201 = por %p199, %p200
      %p202 = scmp.ne.s32.totalorder %s194, %s196
      %p203 = scmp.eq.s32.totalorder %s34, 1
      %p204 = por %p202, %p203
      %p205 = scmp.ne.s32.totalorder %s196, %s197
      %p206 = scmp.eq.s32.totalorder %s34, 0
      %p207 = por %p205, %p206
      %p208 = scmp.ne.s32.totalorder %s196, %s197
      %p209 = scmp.eq.s32.totalorder %s35, 1
      %p210 = por %p208, %p209
      %p212 = scmp.ne.s32.totalorder %s197, %s211
      %p213 = scmp.eq.s32.totalorder %s35, 0
      %p214 = por %p212, %p213
      %s216 = sadd.s32 %s215, 1
      %p219 = scmp.eq.s32.totalorder %s29, 1
      %p220 = scmp.ne.s32.totalorder %s215, %s217
      %p221 = scmp.eq.s32.totalorder %s29, 0
      %p222 = por %p220, %p221
      %p223 = scmp.ne.s32.totalorder %s215, %s217
      %p224 = scmp.eq.s32.totalorder %s34, 1
      %p225 = por %p223, %p224
      %p226 = scmp.ne.s32.totalorder %s217, %s218
      %p227 = scmp.eq.s32.totalorder %s34, 0
      %p228 = por %p226, %p227
      %p229 = scmp.ne.s32.totalorder %s217, %s218
      %p230 = scmp.eq.s32.totalorder %s35, 1
      %p231 = por %p229, %p230
      %p233 = scmp.ne.s32.totalorder %s218, %s232
      %p234 = scmp.eq.s32.totalorder %s35, 0
      %p235 = por %p233, %p234
      %s237 = sadd.s32 %s236, 1
      %p240 = scmp.eq.s32.totalorder %s29, 1
      %p241 = scmp.ne.s32.totalorder %s236, %s238
      %p242 = scmp.eq.s32.totalorder %s29, 0
      %p243 = por %p241, %p242
      %p244 = scmp.ne.s32.totalorder %s236, %s238
      %p245 = scmp.eq.s32.totalorder %s34, 1
      %p246 = por %p244, %p245
      %p247 = scmp.ne.s32.totalorder %s238, %s239
      %p248 = scmp.eq.s32.totalorder %s34, 0
      %p249 = por %p247, %p248
      %p250 = scmp.ne.s32.totalorder %s238, %s239
      %p251 = scmp.eq.s32.totalorder %s35, 1
      %p252 = por %p250, %p251
      %p254 = scmp.ne.s32.totalorder %s239, %s253
      %p255 = scmp.eq.s32.totalorder %s35, 0
      %p256 = por %p254, %p255
      %s257 = ssub.s32 %s29, %s36
      %p258 = scmp.eq.s32.totalorder %s257, 0
      %s260 = sadd.s32 %s259, 1
      %s261 = scalar_select %p258, %s259, %s260
      %p264 = pneg %p258
      %p265 = scmp.eq.s32.totalorder %s29, 1
      %p266 = por %p264, %p265
      %p267 = scmp.ne.s32.totalorder %s259, %s262
      %p268 = scmp.eq.s32.totalorder %s29, 0
      %p269 = por %p267, %p268
      %p270 = scmp.ne.s32.totalorder %s259, %s262
      %p271 = scmp.eq.s32.totalorder %s34, 1
      %p272 = por %p270, %p271
      %p273 = scmp.ne.s32.totalorder %s262, %s263
      %p274 = scmp.eq.s32.totalorder %s34, 0
      %p275 = por %p273, %p274
      %p276 = scmp.ne.s32.totalorder %s262, %s263
      %p277 = scmp.eq.s32.totalorder %s35, 1
      %p278 = por %p276, %p277
      %p280 = scmp.ne.s32.totalorder %s263, %s279
      %p281 = scmp.eq.s32.totalorder %s35, 0
      %p282 = por %p280, %p281
      %p283 = scmp.le.s32.totalorder 1, %s29
      %p284 = scmp.lt.s32.totalorder %s29, 3
      %p285 = pnand %p283, %p284
      %p286 = pneg %p285
      // Predicated region
      $region9: #{tpu_custom_call.1} parent=5 // pred_check
        _
      $region10: #{tpu_custom_call.1} parent=5 // pred_check_branch
        %288 = sbr.rel (%p285) target = $region12
      $region11: #{tpu_custom_call.1} parent=5 // pred_region
        %s289 = ssub.s32 %s29, 1
        // Predicated region
        $region13: #{tpu_custom_call.1} parent=11 // pred_check
          %p290 = pneg %p102
        $region14: #{tpu_custom_call.1} parent=11 // pred_check_branch
          %292 = sbr.rel (%p290) target = $region16
        $region15: #{tpu_custom_call.1} parent=11 // pred_region
          %s294 = ssub.s32 64, 64
          %295 = vsyncadd [#allocation8], %s294
          %s297 = sshll.u32 [#allocation9], 4
          %s298 = int_to_ptr.vmem [resolvable:$true] %s297
          %300 = dma.hbm_to_vmem [thread:$0]  %s2, 64, %s298, [#allocation8]
        $region16: #{tpu_custom_call.1} parent=11 // pred_fallthru
          _
        // Predicated region
        $region17: #{tpu_custom_call.1} parent=11 // pred_check
          %p301 = pneg %p123
        $region18: #{tpu_custom_call.1} parent=11 // pred_check_branch
          %303 = sbr.rel (%p301) target = $region20
        $region19: #{tpu_custom_call.1} parent=11 // pred_region
          %s305 = ssub.s32 64, 64
          %306 = vsyncadd [#allocation11], %s305
          %s308 = sshll.u32 [#allocation10], 4
          %s309 = int_to_ptr.vmem [resolvable:$true] %s308
          %311 = dma.hbm_to_vmem [thread:$0]  %s3, 64, %s309, [#allocation11]
        $region20: #{tpu_custom_call.1} parent=11 // pred_fallthru
          _
        // Predicated region
        $region21: #{tpu_custom_call.1} parent=11 // pred_check
          %p312 = pneg %p144
        $region22: #{tpu_custom_call.1} parent=11 // pred_check_branch
          %314 = sbr.rel (%p312) target = $region24
        $region23: #{tpu_custom_call.1} parent=11 // pred_region
          %s316 = ssub.s32 16, 16
          %317 = vsyncadd [#allocation11], %s316
          %s319 = sshll.u32 [#allocation12], 4
          %s320 = int_to_ptr.vmem [resolvable:$true] %s319
          %322 = dma.hbm_to_vmem [thread:$0]  %s4, 16, %s320, [#allocation11]
        $region24: #{tpu_custom_call.1} parent=11 // pred_fallthru
          _
        // Predicated region
        $region25: #{tpu_custom_call.1} parent=11 // pred_check
          %p323 = pneg %p165
        $region26: #{tpu_custom_call.1} parent=11 // pred_check_branch
          %325 = sbr.rel (%p323) target = $region28
        $region27: #{tpu_custom_call.1} parent=11 // pred_region
          %s327 = ssub.s32 512, 512
          %328 = vsyncadd [#allocation14], %s327
          %s329 = sshll.u32 [#allocation13], 4
          %s330 = int_to_ptr.vmem [resolvable:$true] %s329
          %335 = dma.hbm_to_vmem [thread:$0]  %s5, 512, %s330, [#allocation14], 128, 128, 8
        $region28: #{tpu_custom_call.1} parent=11 // pred_fallthru
          _
        // Predicated region
        $region29: #{tpu_custom_call.1} parent=11 // pred_check
          %p336 = pneg %p186
        $region30: #{tpu_custom_call.1} parent=11 // pred_check_branch
          %338 = sbr.rel (%p336) target = $region32
        $region31: #{tpu_custom_call.1} parent=11 // pred_region
          %s340 = ssub.s32 16, 16
          %341 = vsyncadd [#allocation14], %s340
          %s343 = sshll.u32 [#allocation15], 4
          %s344 = int_to_ptr.vmem [resolvable:$true] %s343
          %346 = dma.hbm_to_vmem [thread:$0]  %s6, 16, %s344, [#allocation14]
        $region32: #{tpu_custom_call.1} parent=11 // pred_fallthru
          _
        // Predicated region
        $region33: #{tpu_custom_call.1} parent=11 // pred_check
          %p347 = pneg %p207
        $region34: #{tpu_custom_call.1} parent=11 // pred_check_branch
          %349 = sbr.rel (%p347) target = $region36
        $region35: #{tpu_custom_call.1} parent=11 // pred_region
          %s351 = ssub.s32 2048, 2048
          %352 = vsyncadd [#allocation17], %s351
          %s353 = sshll.u32 [#allocation16], 4
          %s354 = int_to_ptr.vmem [resolvable:$true] %s353
          %359 = dma.hbm_to_vmem [thread:$0]  %s7, 2048, %s354, [#allocation17], 128, 128, 8
        $region36: #{tpu_custom_call.1} parent=11 // pred_fallthru
          _
        // Predicated region
        $region37: #{tpu_custom_call.1} parent=11 // pred_check
          %p360 = pneg %p228
        $region38: #{tpu_custom_call.1} parent=11 // pred_check_branch
          %362 = sbr.rel (%p360) target = $region40
        $region39: #{tpu_custom_call.1} parent=11 // pred_region
          %s364 = ssub.s32 16, 16
          %365 = vsyncadd [#allocation17], %s364
          %s367 = sshll.u32 [#allocation18], 4
          %s368 = int_to_ptr.vmem [resolvable:$true] %s367
          %370 = dma.hbm_to_vmem [thread:$0]  %s8, 16, %s368, [#allocation17]
        $region40: #{tpu_custom_call.1} parent=11 // pred_fallthru
          _
        // Predicated region
        $region41: #{tpu_custom_call.1} parent=11 // pred_check
          %p371 = pneg %p249
        $region42: #{tpu_custom_call.1} parent=11 // pred_check_branch
          %373 = sbr.rel (%p371) target = $region44
        $region43: #{tpu_custom_call.1} parent=11 // pred_region
          %s375 = ssub.s32 2048, 2048
          %376 = vsyncadd [#allocation20], %s375
          %s377 = sshll.u32 [#allocation19], 4
          %s378 = int_to_ptr.vmem [resolvable:$true] %s377
          %383 = dma.hbm_to_vmem [thread:$0]  %s9, 2048, %s378, [#allocation20], 128, 128, 8
        $region44: #{tpu_custom_call.1} parent=11 // pred_fallthru
          _
      $region12: #{tpu_custom_call.1} parent=5 // pred_fallthru
        _
      %p384 = scmp.lt.s32.totalorder %s29, 2
      // Predicated region
      $region45: #{tpu_custom_call.1} parent=5 // pred_check
        %p385 = pneg %p384
      $region46: #{tpu_custom_call.1} parent=5 // pred_check_branch
        %387 = sbr.rel (%p385) target = $region48
      $region47: #{tpu_custom_call.1} parent=5 // pred_region
        // Predicated region
        $region49: #{tpu_custom_call.1} parent=47 // pred_check
          %p388 = pneg %p49
        $region50: #{tpu_custom_call.1} parent=47 // pred_check_branch
          %390 = sbr.rel (%p388) target = $region52
        $region51: #{tpu_custom_call.1} parent=47 // pred_region
          %s391 = sand.u32 %s39, 1
          %s392 = scalar_lea.sflag [#allocation5], %s391
          %s393 = sand.u32 %s39, 1
          %s394 = smul.addr %s393, 8
          %s395 = scalar_lea.vmem [#allocation4], %s394
          %s397 = ssub.s32 128, 128
          %398 = vsyncadd %s392, %s397
          %s399 = smul.addr %s29, 128
          %s400 = scalar_lea.hbm %s0, %s399
          %s402 = sshll.u32 %s395, 4
          %s403 = int_to_ptr.vmem [resolvable:$true] %s402
          %405 = dma.hbm_to_vmem [thread:$0]  %s400, 128, %s403, %s392
        $region52: #{tpu_custom_call.1} parent=47 // pred_fallthru
          _
        // Predicated region
        $region53: #{tpu_custom_call.1} parent=47 // pred_check
          %p406 = pneg %p75
        $region54: #{tpu_custom_call.1} parent=47 // pred_check_branch
          %408 = sbr.rel (%p406) target = $region56
        $region55: #{tpu_custom_call.1} parent=47 // pred_region
          %s409 = sand.u32 %s29, 1
          %s410 = scalar_lea.sflag [#allocation8], %s409
          %s411 = sand.u32 %s65, 1
          %s412 = smul.addr %s411, 8
          %s413 = scalar_lea.vmem [#allocation7], %s412
          %s415 = ssub.s32 128, 128
          %416 = vsyncadd %s410, %s415
          %s417 = smul.addr %s29, 128
          %s418 = scalar_lea.hbm %s1, %s417
          %s420 = sshll.u32 %s413, 4
          %s421 = int_to_ptr.vmem [resolvable:$true] %s420
          %423 = dma.hbm_to_vmem [thread:$0]  %s418, 128, %s421, %s410
        $region56: #{tpu_custom_call.1} parent=47 // pred_fallthru
          _
      $region48: #{tpu_custom_call.1} parent=5 // pred_fallthru
        _
      %p424 = scmp.le.s32.totalorder 1, %s29
      %p425 = scmp.lt.s32.totalorder %s29, 3
      %p426 = pnand %p424, %p425
      %p427 = pneg %p426
      // Predicated region
      $region57: #{tpu_custom_call.1} parent=5 // pred_check
        _
      $region58: #{tpu_custom_call.1} parent=5 // pred_check_branch
        %429 = sbr.rel (%p426) target = $region60
      $region59: #{tpu_custom_call.1} parent=5 // pred_region
        %s430 = ssub.s32 %s29, 1
        %s431 = sand.u32 %s42, 1
        %s432 = scalar_lea.sflag [#allocation5], %s431
        %s433 = sand.u32 %s42, 1
        %s434 = smul.addr %s433, 8
        %s435 = scalar_lea.vmem [#allocation4], %s434
        // Predicated region
        $region61: #{tpu_custom_call.1} parent=59 // pred_check
          %p436 = pneg %p55
        $region62: #{tpu_custom_call.1} parent=59 // pred_check_branch
          %438 = sbr.rel (%p436) target = $region64
        $region63: #{tpu_custom_call.1} parent=59 // pred_region
          %439 = dma.done %s432, 128
        $region64: #{tpu_custom_call.1} parent=59 // pred_fallthru
          _
        %s440 = sand.u32 %s34, 1
        %s441 = scalar_lea.sflag [#allocation8], %s440
        %s442 = sand.u32 %s68, 1
        %s443 = smul.addr %s442, 8
        %s444 = scalar_lea.vmem [#allocation7], %s443
        // Predicated region
        $region65: #{tpu_custom_call.1} parent=59 // pred_check
          %p445 = pneg %p81
        $region66: #{tpu_custom_call.1} parent=59 // pred_check_branch
          %447 = sbr.rel (%p445) target = $region68
        $region67: #{tpu_custom_call.1} parent=59 // pred_region
          %448 = dma.done %s441, 128
        $region68: #{tpu_custom_call.1} parent=59 // pred_fallthru
          _
        // Predicated region
        $region69: #{tpu_custom_call.1} parent=59 // pred_check
          %p449 = pneg %p102
        $region70: #{tpu_custom_call.1} parent=59 // pred_check_branch
          %451 = sbr.rel (%p449) target = $region72
        $region71: #{tpu_custom_call.1} parent=59 // pred_region
          %452 = dma.done [#allocation8], 64
        $region72: #{tpu_custom_call.1} parent=59 // pred_fallthru
          _
        // Predicated region
        $region73: #{tpu_custom_call.1} parent=59 // pred_check
          %p453 = pneg %p123
        $region74: #{tpu_custom_call.1} parent=59 // pred_check_branch
          %455 = sbr.rel (%p453) target = $region76
        $region75: #{tpu_custom_call.1} parent=59 // pred_region
          %456 = dma.done [#allocation11], 64
        $region76: #{tpu_custom_call.1} parent=59 // pred_fallthru
          _
        // Predicated region
        $region77: #{tpu_custom_call.1} parent=59 // pred_check
          %p457 = pneg %p144
        $region78: #{tpu_custom_call.1} parent=59 // pred_check_branch
          %459 = sbr.rel (%p457) target = $region80
        $region79: #{tpu_custom_call.1} parent=59 // pred_region
          %460 = dma.done [#allocation11], 16
        $region80: #{tpu_custom_call.1} parent=59 // pred_fallthru
          _
        // Predicated region
        $region81: #{tpu_custom_call.1} parent=59 // pred_check
          %p461 = pneg %p165
        $region82: #{tpu_custom_call.1} parent=59 // pred_check_branch
          %463 = sbr.rel (%p461) target = $region84
        $region83: #{tpu_custom_call.1} parent=59 // pred_region
          %464 = dma.done [#allocation14], 512
        $region84: #{tpu_custom_call.1} parent=59 // pred_fallthru
          _
        // Predicated region
        $region85: #{tpu_custom_call.1} parent=59 // pred_check
          %p465 = pneg %p186
        $region86: #{tpu_custom_call.1} parent=59 // pred_check_branch
          %467 = sbr.rel (%p465) target = $region88
        $region87: #{tpu_custom_call.1} parent=59 // pred_region
          %468 = dma.done [#allocation14], 16
        $region88: #{tpu_custom_call.1} parent=59 // pred_fallthru
          _
        // Predicated region
        $region89: #{tpu_custom_call.1} parent=59 // pred_check
          %p469 = pneg %p207
        $region90: #{tpu_custom_call.1} parent=59 // pred_check_branch
          %471 = sbr.rel (%p469) target = $region92
        $region91: #{tpu_custom_call.1} parent=59 // pred_region
          %472 = dma.done [#allocation17], 2048
        $region92: #{tpu_custom_call.1} parent=59 // pred_fallthru
          _
        // Predicated region
        $region93: #{tpu_custom_call.1} parent=59 // pred_check
          %p473 = pneg %p228
        $region94: #{tpu_custom_call.1} parent=59 // pred_check_branch
          %475 = sbr.rel (%p473) target = $region96
        $region95: #{tpu_custom_call.1} parent=59 // pred_region
          %476 = dma.done [#allocation17], 16
        $region96: #{tpu_custom_call.1} parent=59 // pred_fallthru
          _
        // Predicated region
        $region97: #{tpu_custom_call.1} parent=59 // pred_check
          %p477 = pneg %p249
        $region98: #{tpu_custom_call.1} parent=59 // pred_check_branch
          %479 = sbr.rel (%p477) target = $region100
        $region99: #{tpu_custom_call.1} parent=59 // pred_region
          %480 = dma.done [#allocation20], 2048
        $region100: #{tpu_custom_call.1} parent=59 // pred_fallthru
          _
        %s481 = sand.u32 %s42, 1
        %s482 = scalar_lea.sflag [#allocation5], %s481
        %s483 = sand.u32 %s42, 1
        %s484 = smul.addr %s483, 8
        %s485 = scalar_lea.vmem [#allocation4], %s484
        %p486 = pneg %p55
        %p487 = pneg %p52
        %s488 = sand.u32 %s34, 1
        %s489 = scalar_lea.sflag [#allocation8], %s488
        %s490 = sand.u32 %s68, 1
        %s491 = smul.addr %s490, 8
        %s492 = scalar_lea.vmem [#allocation7], %s491
        %p493 = pneg %p81
        %p494 = pneg %p78
        %p495 = pneg %p102
        %p496 = pneg %p99
        %p497 = pneg %p123
        %p498 = pneg %p120
        %p499 = pneg %p144
        %p500 = pneg %p141
        %p501 = pneg %p165
        %p502 = pneg %p162
        %p503 = pneg %p186
        %p504 = pneg %p183
        %p505 = pneg %p207
        %p506 = pneg %p204
        %p507 = pneg %p228
        %p508 = pneg %p225
        %p509 = pneg %p249
        %p510 = pneg %p246
        %p511 = pneg %p275
        %p512 = pneg %p272
        %s513 = sand.u32 %s262, 1
        %s514 = scalar_lea.sflag [#allocation6], %s513
        %s515 = sand.u32 %s262, 1
        %s516 = smul.addr %s515, 8
        %s517 = scalar_lea.vmem [#allocation21], %s516
        %v518 = vld [vmem:[%s435] sm:$0xff]
        %v519 = vld [vmem:[%s444] sm:$0xff]
        %v521 = vrot.slane %v518, 7
        %v523 = vsub.f32 %v518, %v521
        %v525 = vrot.slane %v519, 7
        %v527 = vsub.f32 %v519, %v525
        %v528 = vrot.slane %v518, 1
        %v530 = vsub.f32 %v519, %v528
        %v531 = vsub.f32 %v519, %v521
        %v532 = vld [vmem:[#allocation10] sm:$0xf]
        %v533 = vld [vmem:[#allocation12] sm:$0x1]
        %v535 = vlaneseq
        %v536 = vshrl.u32 %v535, 7
        %v537 = vsub.s32 0, %v536
        %v538 = vrot.slane %v533, %v537
        %v540 = vadd.f32 %v538, 0.0
        %v541 = vmul.f32 %v523, %v523
        %vm542 = vcmask 23553
        %v543 = vsel %vm542, %v541, 0.0
        %544 = vadd.xlane.f32.xlu0 %v543
        %v545 = vpop.xlane.xlu0 %544
        %v546 = vrsqrt.pop %v545
        %v547 = vmul.f32 %v545, %v546
        %vm548 = vcmp.eq.f32.partialorder %v545, inf
        %v549 = vsel %vm548, %v545, %v547
        %vm550 = vcmp.eq.f32.partialorder %v545, 0.0
        %v551 = vand.u32 %v545, 2147483648
        %v552 = vsel %vm550, %v551, %v549
        %v553 = vlaneseq
        %v554 = vshrl.u32 %v553, 7
        %v555 = vsub.s32 0, %v554
        %v556 = vrot.slane %v532, %v555
        %v557 = vmul.f32 %v552, %v556
        %v558 = vadd.f32 %v540, %v557
        %v559 = vmul.f32 %v527, %v527
        %v560 = vsel %vm542, %v559, 0.0
        %561 = vadd.xlane.f32.xlu0 %v560
        %v562 = vpop.xlane.xlu0 %561
        %v563 = vrsqrt.pop %v562
        %v564 = vmul.f32 %v562, %v563
        %vm565 = vcmp.eq.f32.partialorder %v562, inf
        %v566 = vsel %vm565, %v562, %v564
        %vm567 = vcmp.eq.f32.partialorder %v562, 0.0
        %v568 = vand.u32 %v562, 2147483648
        %v569 = vsel %vm567, %v568, %v566
        %v570 = vlaneseq
        %v571 = vshrl.u32 %v570, 7
        %v572 = vsub.s32 1, %v571
        %v573 = vrot.slane %v532, %v572
        %v574 = vmul.f32 %v569, %v573
        %v575 = vadd.f32 %v558, %v574
        %v576 = vmul.f32 %v530, %v530
        %vm577 = vcmask 22528
        %v578 = vsel %vm577, %v576, 0.0
        %579 = vadd.xlane.f32.xlu0 %v578
        %v580 = vpop.xlane.xlu0 %579
        %v581 = vrsqrt.pop %v580
        %v582 = vmul.f32 %v580, %v581
        %vm583 = vcmp.eq.f32.partialorder %v580, inf
        %v584 = vsel %vm583, %v580, %v582
        %vm585 = vcmp.eq.f32.partialorder %v580, 0.0
        %v586 = vand.u32 %v580, 2147483648
        %v587 = vsel %vm585, %v586, %v584
        %v588 = vlaneseq
        %v589 = vshrl.u32 %v588, 7
        %v590 = vsub.s32 2, %v589
        %v591 = vrot.slane %v532, %v590
        %v592 = vmul.f32 %v587, %v591
        %v594 = vrot.slane %v592, 7
        %v596 = vadd.f32 %v575, %v594
        %v597 = vmul.f32 %v531, %v531
        %v598 = vsel %vm542, %v597, 0.0
        %599 = vadd.xlane.f32.xlu0 %v598
        %v600 = vpop.xlane.xlu0 %599
        %v601 = vrsqrt.pop %v600
        %v602 = vmul.f32 %v600, %v601
        %vm603 = vcmp.eq.f32.partialorder %v600, inf
        %v604 = vsel %vm603, %v600, %v602
        %vm605 = vcmp.eq.f32.partialorder %v600, 0.0
        %v606 = vand.u32 %v600, 2147483648
        %v607 = vsel %vm605, %v606, %v604
        %v608 = vlaneseq
        %v609 = vshrl.u32 %v608, 7
        %v610 = vsub.s32 3, %v609
        %v611 = vrot.slane %v532, %v610
        %v612 = vmul.f32 %v607, %v611
        %v613 = vadd.f32 %v596, %v612
        %vm614 = vcmp.gt.f32.partialorder %v613, 0.0
        %v615 = vmul.f32 %v613, 0.2
        %v616 = vsel %vm614, %v613, %v615
        %v617 = vld [vmem:[#allocation13] sm:$0xff]
        %v618 = vld [vmem:[#allocation13 + $0x8] sm:$0xff]
        %v619 = vld [vmem:[#allocation13 + $0x10] sm:$0xff]
        %v620 = vld [vmem:[#allocation13 + $0x18] sm:$0xff]
        %v621 = vld [vmem:[#allocation15] sm:$0x1]
        %v623 = vlaneseq
        %v624 = vshrl.u32 %v623, 7
        %v625 = vsub.s32 0, %v624
        %v626 = vrot.slane %v621, %v625
        %v629 = vrot.slane %v616, 1
        %vm630 = vcmask 261120
        %v631 = vsel %vm630, %v629, 0
        %633 = vmatprep.subr.mxu0 0.0
        %634 = vmatpush1.msra.mxu0 %v617
        %635 = vmatprep.subr.mxu0 0.0
        %636 = vmatpush1.msra.mxu0 %v618
        %637 = vmatprep.subr.mxu0 0.0
        %638 = vmatpush1.msra.mxu0 %v619
        %639 = vmatprep.subr.mxu0 0.0
        %640 = vmatpush1.msra.mxu0 %v620
        %641 = vmatprep.subr.mxu0 0.0
        %642 = vmatpush1.msra.mxu0 0.0
        %643 = vmatprep.subr.mxu0 0.0
        %644 = vmatpush1.msra.mxu0 0.0
        %645 = vmatprep.subr.mxu0 0.0
        %646 = vmatpush1.msra.mxu0 0.0
        %647 = vmatprep.subr.mxu0 0.0
        %648 = vmatpush1.msra.mxu0 0.0
        %649 = vmatprep.subr.mxu0 0.0
        %650 = vmatpush1.msra.mxu0 0.0
        %651 = vmatprep.subr.mxu0 0.0
        %652 = vmatpush1.msra.mxu0 0.0
        %653 = vmatprep.subr.mxu0 0.0
        %654 = vmatpush1.msra.mxu0 0.0
        %655 = vmatprep.subr.mxu0 0.0
        %656 = vmatpush1.msra.mxu0 0.0
        %657 = vmatprep.subr.mxu0 0.0
        %658 = vmatpush1.msra.mxu0 0.0
        %659 = vmatprep.subr.mxu0 0.0
        %660 = vmatpush1.msra.mxu0 0.0
        %661 = vmatprep.subr.mxu0 0.0
        %662 = vmatpush1.msra.mxu0 0.0
        %663 = vmatprep.subr.mxu0 0.0
        %664 = vmatpush1.msra.mxu0 0.0
        %665 = vmatprep.subr.mxu0 0.0
        %666 = vmatpush1.msra.mxu0 0.0
        %667 = vmatprep.subr.mxu0 0.0
        %668 = vmatpush1.msra.mxu0 0.0
        %669 = vmatprep.subr.mxu0 0.0
        %670 = vmatpush1.msra.mxu0 0.0
        %671 = vmatprep.subr.mxu0 0.0
        %672 = vmatpush1.msra.mxu0 0.0
        %673 = vmatprep.subr.mxu0 0.0
        %674 = vmatpush1.msra.mxu0 0.0
        %675 = vmatprep.subr.mxu0 0.0
        %676 = vmatpush1.msra.mxu0 0.0
        %677 = vmatprep.subr.mxu0 0.0
        %678 = vmatpush1.msra.mxu0 0.0
        %679 = vmatprep.subr.mxu0 0.0
        %680 = vmatpush1.msra.mxu0 0.0
        %681 = vmatprep.subr.mxu0 0.0
        %682 = vmatpush1.msra.mxu0 0.0
        %683 = vmatprep.subr.mxu0 0.0
        %684 = vmatpush1.msra.mxu0 0.0
        %685 = vmatprep.subr.mxu0 0.0
        %686 = vmatpush1.msra.mxu0 0.0
        %687 = vmatprep.subr.mxu0 0.0
        %688 = vmatpush1.msra.mxu0 0.0
        %689 = vmatprep.subr.mxu0 0.0
        %690 = vmatpush1.msra.mxu0 0.0
        %691 = vmatprep.subr.mxu0 0.0
        %692 = vmatpush1.msra.mxu0 0.0
        %693 = vmatprep.subr.mxu0 0.0
        %694 = vmatpush1.msra.mxu0 0.0
        %695 = vmatprep.subr.mxu0 0.0
        %696 = vmatpush1.msra.mxu0 0.0
        %697 = vmatprep.mubr.f32.mxu0 0.0
        %698 = vmatmul.mubr.f32.gmra.mrb[0].mxu0 %v631
        %v699 = vpop.f32.mrb[0].mxu0
        %v700 = vadd.f32 %v626, %v699
        %v701 = vpop.f32.mrb[0].mxu0
        %702 = vdwg.mxu0
        %vm703 = vcmask 254976
        %704 = vst.msk [vmem:[#allocation2] sm:$0x3] %vm703, 0.0
        %vm705 = vcmask 259072
        %706 = vst.msk [vmem:[#allocation2 + $0x2] sm:$0x3f] %vm705, %v700
        %vm707 = vcmask 516352
        %708 = vst.msk [vmem:[#allocation2] sm:$0x1] %vm707, 0.0
        %710 = vrot.lane.b32.xlu0 %v700, 32
        %v711 = vpop.permute.xlu0 %710
        %vm713 = vcmask 522496
        %714 = vst.msk [vmem:[#allocation2 + $0x1] sm:$0x7f] %vm713, %v711
        %715 = vrot.lane.b32.xlu0 %v700, 64
        %v716 = vpop.permute.xlu0 %715
        %vm718 = vcmask 784896
        %719 = vst.msk [vmem:[#allocation2] sm:$0x7f] %vm718, %v716
        %vm720 = vcmask 778752
        %721 = vst.msk [vmem:[#allocation2 + $0x7] sm:$0x1] %vm720, 0.0
        %722 = vrot.lane.b32.xlu0 %v700, 96
        %v723 = vpop.permute.xlu0 %722
        %vm725 = vcmask 1047297
        %726 = vst.msk [vmem:[#allocation2 - $0x1] sm:$0x7e] %vm725, %v723
        %vm727 = vcmask 1042176
        %728 = vst.msk [vmem:[#allocation2 + $0x6] sm:$0x3] %vm727, 0.0
        %v729 = vld [vmem:[#allocation2] sm:$0xff]
        %v730 = vld [vmem:[#allocation16] sm:$0xff]
        %v731 = vld [vmem:[#allocation16 + $0x8] sm:$0xff]
        %v732 = vld [vmem:[#allocation16 + $0x10] sm:$0xff]
        %v733 = vld [vmem:[#allocation16 + $0x18] sm:$0xff]
        %v734 = vld [vmem:[#allocation16 + $0x20] sm:$0xff]
        %v735 = vld [vmem:[#allocation16 + $0x28] sm:$0xff]
        %v736 = vld [vmem:[#allocation16 + $0x30] sm:$0xff]
        %v737 = vld [vmem:[#allocation16 + $0x38] sm:$0xff]
        %v738 = vld [vmem:[#allocation16 + $0x40] sm:$0xff]
        %v739 = vld [vmem:[#allocation16 + $0x48] sm:$0xff]
        %v740 = vld [vmem:[#allocation16 + $0x50] sm:$0xff]
        %v741 = vld [vmem:[#allocation16 + $0x58] sm:$0xff]
        %v742 = vld [vmem:[#allocation16 + $0x60] sm:$0xff]
        %v743 = vld [vmem:[#allocation16 + $0x68] sm:$0xff]
        %v744 = vld [vmem:[#allocation16 + $0x70] sm:$0xff]
        %v745 = vld [vmem:[#allocation16 + $0x78] sm:$0xff]
        %v746 = vld [vmem:[#allocation18] sm:$0x1]
        %v748 = vlaneseq
        %v749 = vshrl.u32 %v748, 7
        %v750 = vsub.s32 0, %v749
        %v751 = vrot.slane %v746, %v750
        %753 = vmatprep.subr.mxu0 0.0
        %754 = vmatpush1.msra.mxu0 %v730
        %755 = vmatprep.subr.mxu0 0.0
        %756 = vmatpush1.msra.mxu0 %v731
        %757 = vmatprep.subr.mxu0 0.0
        %758 = vmatpush1.msra.mxu0 %v732
        %759 = vmatprep.subr.mxu0 0.0
        %760 = vmatpush1.msra.mxu0 %v733
        %761 = vmatprep.subr.mxu0 0.0
        %762 = vmatpush1.msra.mxu0 %v734
        %763 = vmatprep.subr.mxu0 0.0
        %764 = vmatpush1.msra.mxu0 %v735
        %765 = vmatprep.subr.mxu0 0.0
        %766 = vmatpush1.msra.mxu0 %v736
        %767 = vmatprep.subr.mxu0 0.0
        %768 = vmatpush1.msra.mxu0 %v737
        %769 = vmatprep.subr.mxu0 0.0
        %770 = vmatpush1.msra.mxu0 %v738
        %771 = vmatprep.subr.mxu0 0.0
        %772 = vmatpush1.msra.mxu0 %v739
        %773 = vmatprep.subr.mxu0 0.0
        %774 = vmatpush1.msra.mxu0 %v740
        %775 = vmatprep.subr.mxu0 0.0
        %776 = vmatpush1.msra.mxu0 %v741
        %777 = vmatprep.subr.mxu0 0.0
        %778 = vmatpush1.msra.mxu0 %v742
        %779 = vmatprep.subr.mxu0 0.0
        %780 = vmatpush1.msra.mxu0 %v743
        %781 = vmatprep.subr.mxu0 0.0
        %782 = vmatpush1.msra.mxu0 %v744
        %783 = vmatprep.subr.mxu0 0.0
        %784 = vmatpush1.msra.mxu0 %v745
        %785 = vmatprep.subr.mxu0 0.0
        %786 = vmatpush1.msra.mxu0 0.0
        %787 = vmatprep.subr.mxu0 0.0
        %788 = vmatpush1.msra.mxu0 0.0
        %789 = vmatprep.subr.mxu0 0.0
        %790 = vmatpush1.msra.mxu0 0.0
        %791 = vmatprep.subr.mxu0 0.0
        %792 = vmatpush1.msra.mxu0 0.0
        %793 = vmatprep.subr.mxu0 0.0
        %794 = vmatpush1.msra.mxu0 0.0
        %795 = vmatprep.subr.mxu0 0.0
        %796 = vmatpush1.msra.mxu0 0.0
        %797 = vmatprep.subr.mxu0 0.0
        %798 = vmatpush1.msra.mxu0 0.0
        %799 = vmatprep.subr.mxu0 0.0
        %800 = vmatpush1.msra.mxu0 0.0
        %801 = vmatprep.subr.mxu0 0.0
        %802 = vmatpush1.msra.mxu0 0.0
        %803 = vmatprep.subr.mxu0 0.0
        %804 = vmatpush1.msra.mxu0 0.0
        %805 = vmatprep.subr.mxu0 0.0
        %806 = vmatpush1.msra.mxu0 0.0
        %807 = vmatprep.subr.mxu0 0.0
        %808 = vmatpush1.msra.mxu0 0.0
        %809 = vmatprep.subr.mxu0 0.0
        %810 = vmatpush1.msra.mxu0 0.0
        %811 = vmatprep.subr.mxu0 0.0
        %812 = vmatpush1.msra.mxu0 0.0
        %813 = vmatprep.subr.mxu0 0.0
        %814 = vmatpush1.msra.mxu0 0.0
        %815 = vmatprep.subr.mxu0 0.0
        %816 = vmatpush1.msra.mxu0 0.0
        %817 = vmatprep.mubr.f32.mxu0 0.0
        %818 = vmatmul.mubr.f32.gmra.mrb[0].mxu0 %v729
        %v819 = vpop.f32.mrb[0].mxu0
        %v820 = vadd.f32 %v751, %v819
        %v821 = vpop.f32.mrb[0].mxu0
        %822 = vdwg.mxu0
        %823 = vst.msk [vmem:[%s517] sm:$0xff] %vm630, %v820
        %v824 = vld [vmem:[#allocation9] sm:$0xf]
        %826 = vset.pattern.permute.xlu0 0
        %827 = vperm.xlu0 %826, %v523
        %v828 = vpop.permute.xlu0 %827
        %v830 = vlaneseq
        %v831 = vshrl.u32 %v830, 7
        %v832 = vsub.s32 0, %v831
        %v833 = vrot.slane %v824, %v832
        %v834 = vmul.f32 %v828, %v833
        %v835 = vadd.f32 %v834, 0.0
        %837 = vset.pattern.permute.xlu0 0
        %838 = vperm.xlu0 %837, %v527
        %v839 = vpop.permute.xlu0 %838
        %v841 = vlaneseq
        %v842 = vshrl.u32 %v841, 7
        %v843 = vsub.s32 1, %v842
        %v844 = vrot.slane %v824, %v843
        %v845 = vmul.f32 %v839, %v844
        %v846 = vadd.f32 %v835, %v845
        %848 = vset.pattern.permute.xlu0 0
        %849 = vperm.xlu0 %848, %v530
        %v850 = vpop.permute.xlu0 %849
        %v852 = vlaneseq
        %v853 = vshrl.u32 %v852, 7
        %v854 = vsub.s32 2, %v853
        %v855 = vrot.slane %v824, %v854
        %v856 = vmul.f32 %v850, %v855
        %v858 = vrot.slane %v856, 7
        %v860 = vadd.f32 %v846, %v858
        %862 = vset.pattern.permute.xlu0 0
        %863 = vperm.xlu0 %862, %v531
        %v864 = vpop.permute.xlu0 %863
        %v866 = vlaneseq
        %v867 = vshrl.u32 %v866, 7
        %v868 = vsub.s32 3, %v867
        %v869 = vrot.slane %v824, %v868
        %v870 = vmul.f32 %v864, %v869
        %v871 = vadd.f32 %v860, %v870
        %872 = vst.msk [vmem:[#allocation3] sm:$0x3] %vm703, 0.0
        %vm873 = vcmask 260097
        %874 = vst.msk [vmem:[#allocation3 + $0x1] sm:$0x7e] %vm873, %v871
        %875 = vst.msk [vmem:[#allocation3] sm:$0x1] %vm707, 0.0
        %877 = vrot.lane.b32.xlu0 %v871, 32
        %v878 = vpop.permute.xlu0 %877
        %vm880 = vcmask 523521
        %881 = vst.msk [vmem:[#allocation3] sm:$0xfe] %vm880, %v878
        %882 = vrot.lane.b32.xlu0 %v871, 64
        %v883 = vpop.permute.xlu0 %882
        %vm885 = vcmask 785921
        %886 = vst.msk [vmem:[#allocation3 - $0x1] sm:$0xfe] %vm885, %v883
        %887 = vst.msk [vmem:[#allocation3 + $0x7] sm:$0x1] %vm720, 0.0
        %888 = vrot.lane.b32.xlu0 %v871, 96
        %v889 = vpop.permute.xlu0 %888
        %vm891 = vcmask 1048322
        %892 = vst.msk [vmem:[#allocation3 - $0x2] sm:$0xfc] %vm891, %v889
        %893 = vst.msk [vmem:[#allocation3 + $0x6] sm:$0x3] %vm727, 0.0
        %894 = vset.pattern.permute.xlu0 1
        %895 = vperm.xlu0 %894, %v523
        %v896 = vpop.permute.xlu0 %895
        %v898 = vmul.f32 %v896, %v833
        %v899 = vadd.f32 %v898, 0.0
        %900 = vset.pattern.permute.xlu0 1
        %901 = vperm.xlu0 %900, %v527
        %v902 = vpop.permute.xlu0 %901
        %v904 = vmul.f32 %v902, %v844
        %v905 = vadd.f32 %v899, %v904
        %906 = vset.pattern.permute.xlu0 1
        %907 = vperm.xlu0 %906, %v530
        %v908 = vpop.permute.xlu0 %907
        %v910 = vmul.f32 %v908, %v855
        %v912 = vrot.slane %v910, 7
        %v914 = vadd.f32 %v905, %v912
        %915 = vset.pattern.permute.xlu0 1
        %916 = vperm.xlu0 %915, %v531
        %v917 = vpop.permute.xlu0 %916
        %v919 = vmul.f32 %v917, %v869
        %v920 = vadd.f32 %v914, %v919
        %921 = vst.msk [vmem:[#allocation3 + $0x8] sm:$0x3] %vm703, 0.0
        %922 = vst.msk [vmem:[#allocation3 + $0x9] sm:$0x7e] %vm873, %v920
        %923 = vst.msk [vmem:[#allocation3 + $0x8] sm:$0x1] %vm707, 0.0
        %925 = vrot.lane.b32.xlu0 %v920, 32
        %v926 = vpop.permute.xlu0 %925
        %928 = vst.msk [vmem:[#allocation3 + $0x8] sm:$0xfe] %vm880, %v926
        %929 = vrot.lane.b32.xlu0 %v920, 64
        %v930 = vpop.permute.xlu0 %929
        %932 = vst.msk [vmem:[#allocation3 + $0x7] sm:$0xfe] %vm885, %v930
        %933 = vst.msk [vmem:[#allocation3 + $0xf] sm:$0x1] %vm720, 0.0
        %934 = vrot.lane.b32.xlu0 %v920, 96
        %v935 = vpop.permute.xlu0 %934
        %937 = vst.msk [vmem:[#allocation3 + $0x6] sm:$0xfc] %vm891, %v935
        %938 = vst.msk [vmem:[#allocation3 + $0xe] sm:$0x3] %vm727, 0.0
        %939 = vset.pattern.permute.xlu0 2
        %940 = vperm.xlu0 %939, %v523
        %v941 = vpop.permute.xlu0 %940
        %v943 = vmul.f32 %v941, %v833
        %v944 = vadd.f32 %v943, 0.0
        %945 = vset.pattern.permute.xlu0 2
        %946 = vperm.xlu0 %945, %v527
        %v947 = vpop.permute.xlu0 %946
        %v949 = vmul.f32 %v947, %v844
        %v950 = vadd.f32 %v944, %v949
        %951 = vset.pattern.permute.xlu0 2
        %952 = vperm.xlu0 %951, %v530
        %v953 = vpop.permute.xlu0 %952
        %v955 = vmul.f32 %v953, %v855
        %v957 = vrot.slane %v955, 7
        %v959 = vadd.f32 %v950, %v957
        %960 = vset.pattern.permute.xlu0 2
        %961 = vperm.xlu0 %960, %v531
        %v962 = vpop.permute.xlu0 %961
        %v964 = vmul.f32 %v962, %v869
        %v965 = vadd.f32 %v959, %v964
        %966 = vst.msk [vmem:[#allocation3 + $0x10] sm:$0x3] %vm703, 0.0
        %967 = vst.msk [vmem:[#allocation3 + $0x11] sm:$0x7e] %vm873, %v965
        %968 = vst.msk [vmem:[#allocation3 + $0x10] sm:$0x1] %vm707, 0.0
        %970 = vrot.lane.b32.xlu0 %v965, 32
        %v971 = vpop.permute.xlu0 %970
        %973 = vst.msk [vmem:[#allocation3 + $0x10] sm:$0xfe] %vm880, %v971
        %974 = vrot.lane.b32.xlu0 %v965, 64
        %v975 = vpop.permute.xlu0 %974
        %977 = vst.msk [vmem:[#allocation3 + $0xf] sm:$0xfe] %vm885, %v975
        %978 = vst.msk [vmem:[#allocation3 + $0x17] sm:$0x1] %vm720, 0.0
        %979 = vrot.lane.b32.xlu0 %v965, 96
        %v980 = vpop.permute.xlu0 %979
        %982 = vst.msk [vmem:[#allocation3 + $0xe] sm:$0xfc] %vm891, %v980
        %983 = vst.msk [vmem:[#allocation3 + $0x16] sm:$0x3] %vm727, 0.0
        %v984 = vld [vmem:[#allocation3] sm:$0xff]
        %v985 = vld [vmem:[#allocation3 + $0x8] sm:$0xff]
        %v986 = vld [vmem:[#allocation3 + $0x10] sm:$0xff]
        %v987 = vld [vmem:[#allocation19] sm:$0xff]
        %v988 = vld [vmem:[#allocation19 + $0x8] sm:$0xff]
        %v989 = vld [vmem:[#allocation19 + $0x10] sm:$0xff]
        %v990 = vld [vmem:[#allocation19 + $0x18] sm:$0xff]
        %v991 = vld [vmem:[#allocation19 + $0x20] sm:$0xff]
        %v992 = vld [vmem:[#allocation19 + $0x28] sm:$0xff]
        %v993 = vld [vmem:[#allocation19 + $0x30] sm:$0xff]
        %v994 = vld [vmem:[#allocation19 + $0x38] sm:$0xff]
        %v995 = vld [vmem:[#allocation19 + $0x40] sm:$0xff]
        %v996 = vld [vmem:[#allocation19 + $0x48] sm:$0xff]
        %v997 = vld [vmem:[#allocation19 + $0x50] sm:$0xff]
        %v998 = vld [vmem:[#allocation19 + $0x58] sm:$0xff]
        %v999 = vld [vmem:[#allocation19 + $0x60] sm:$0xff]
        %v1000 = vld [vmem:[#allocation19 + $0x68] sm:$0xff]
        %v1001 = vld [vmem:[#allocation19 + $0x70] sm:$0xff]
        %v1002 = vld [vmem:[#allocation19 + $0x78] sm:$0xff]
        %1003 = vmatprep.subr.mxu0 0.0
        %1004 = vmatpush1.msra.mxu0 %v987
        %1005 = vmatprep.subr.mxu0 0.0
        %1006 = vmatpush1.msra.mxu0 %v988
        %1007 = vmatprep.subr.mxu0 0.0
        %1008 = vmatpush1.msra.mxu0 %v989
        %1009 = vmatprep.subr.mxu0 0.0
        %1010 = vmatpush1.msra.mxu0 %v990
        %1011 = vmatprep.subr.mxu0 0.0
        %1012 = vmatpush1.msra.mxu0 %v991
        %1013 = vmatprep.subr.mxu0 0.0
        %1014 = vmatpush1.msra.mxu0 %v992
        %1015 = vmatprep.subr.mxu0 0.0
        %1016 = vmatpush1.msra.mxu0 %v993
        %1017 = vmatprep.subr.mxu0 0.0
        %1018 = vmatpush1.msra.mxu0 %v994
        %1019 = vmatprep.subr.mxu0 0.0
        %1020 = vmatpush1.msra.mxu0 %v995
        %1021 = vmatprep.subr.mxu0 0.0
        %1022 = vmatpush1.msra.mxu0 %v996
        %1023 = vmatprep.subr.mxu0 0.0
        %1024 = vmatpush1.msra.mxu0 %v997
        %1025 = vmatprep.subr.mxu0 0.0
        %1026 = vmatpush1.msra.mxu0 %v998
        %1027 = vmatprep.subr.mxu0 0.0
        %1028 = vmatpush1.msra.mxu0 %v999
        %1029 = vmatprep.subr.mxu0 0.0
        %1030 = vmatpush1.msra.mxu0 %v1000
        %1031 = vmatprep.subr.mxu0 0.0
        %1032 = vmatpush1.msra.mxu0 %v1001
        %1033 = vmatprep.subr.mxu0 0.0
        %1034 = vmatpush1.msra.mxu0 %v1002
        %1035 = vmatprep.subr.mxu0 0.0
        %1036 = vmatpush1.msra.mxu0 0.0
        %1037 = vmatprep.subr.mxu0 0.0
        %1038 = vmatpush1.msra.mxu0 0.0
        %1039 = vmatprep.subr.mxu0 0.0
        %1040 = vmatpush1.msra.mxu0 0.0
        %1041 = vmatprep.subr.mxu0 0.0
        %1042 = vmatpush1.msra.mxu0 0.0
        %1043 = vmatprep.subr.mxu0 0.0
        %1044 = vmatpush1.msra.mxu0 0.0
        %1045 = vmatprep.subr.mxu0 0.0
        %1046 = vmatpush1.msra.mxu0 0.0
        %1047 = vmatprep.subr.mxu0 0.0
        %1048 = vmatpush1.msra.mxu0 0.0
        %1049 = vmatprep.subr.mxu0 0.0
        %1050 = vmatpush1.msra.mxu0 0.0
        %1051 = vmatprep.subr.mxu0 0.0
        %1052 = vmatpush1.msra.mxu0 0.0
        %1053 = vmatprep.subr.mxu0 0.0
        %1054 = vmatpush1.msra.mxu0 0.0
        %1055 = vmatprep.subr.mxu0 0.0
        %1056 = vmatpush1.msra.mxu0 0.0
        %1057 = vmatprep.subr.mxu0 0.0
        %1058 = vmatpush1.msra.mxu0 0.0
        %1059 = vmatprep.subr.mxu0 0.0
        %1060 = vmatpush1.msra.mxu0 0.0
        %1061 = vmatprep.subr.mxu0 0.0
        %1062 = vmatpush1.msra.mxu0 0.0
        %1063 = vmatprep.subr.mxu0 0.0
        %1064 = vmatpush1.msra.mxu0 0.0
        %1065 = vmatprep.subr.mxu0 0.0
        %1066 = vmatpush1.msra.mxu0 0.0
        %1067 = vmatprep.mubr.f32.mxu0 0.0
        %1068 = vmatmul.mubr.f32.gmra.mrb[0].mxu0 %v984
        %v1069 = vpop.f32.mrb[0].mxu0
        %v1070 = vadd.f32 0.0, %v1069
        %v1071 = vpop.f32.mrb[0].mxu0
        %1072 = vmatprep.mubr.f32.mxu0 0.0
        %1073 = vmatmul.mubr.f32.gmra.mrb[0].mxu0 %v985
        %v1074 = vpop.f32.mrb[0].mxu0
        %v1075 = vadd.f32 0.0, %v1074
        %v1076 = vpop.f32.mrb[0].mxu0
        %1077 = vmatprep.mubr.f32.mxu0 0.0
        %1078 = vmatmul.mubr.f32.gmra.mrb[0].mxu0 %v986
        %v1079 = vpop.f32.mrb[0].mxu0
        %v1080 = vadd.f32 0.0, %v1079
        %v1081 = vpop.f32.mrb[0].mxu0
        %1082 = vdwg.mxu0
        %1084 = vrot.lane.b32.xlu0 %v1070, 32
        %v1085 = vpop.permute.xlu0 %1084
        %vm1087 = vcmask 523520
        %1088 = vst.msk [vmem:[%s517] sm:$0xff] %vm1087, %v1085
        %1090 = vrot.lane.b32.xlu0 %v1075, 64
        %v1091 = vpop.permute.xlu0 %1090
        %vm1093 = vcmask 785920
        %1094 = vst.msk [vmem:[%s517] sm:$0xff] %vm1093, %v1091
        %1096 = vrot.lane.b32.xlu0 %v1080, 96
        %v1097 = vpop.permute.xlu0 %1096
        %vm1099 = vcmask 1048320
        %1100 = vst.msk [vmem:[%s517] sm:$0xff] %vm1099, %v1097
        %s1101 = sand.u32 %s262, 1
        %s1102 = scalar_lea.sflag [#allocation6], %s1101
        %s1103 = sand.u32 %s262, 1
        %s1104 = smul.addr %s1103, 8
        %s1105 = scalar_lea.vmem [#allocation21], %s1104
        // Predicated region
        $region101: #{tpu_custom_call.1} parent=59 // pred_check
          %p1106 = pneg %p272
        $region102: #{tpu_custom_call.1} parent=59 // pred_check_branch
          %1108 = sbr.rel (%p1106) target = $region104
        $region103: #{tpu_custom_call.1} parent=59 // pred_region
          %s1110 = ssub.s32 128, 128
          %1111 = vsyncadd %s1102, %s1110
          %s1112 = smul.addr %s34, 128
          %s1113 = scalar_lea.hbm %s10, %s1112
          %s1115 = sshll.u32 %s1105, 4
          %s1116 = int_to_ptr.vmem [resolvable:$true] %s1115
          %1118 = dma.vmem_to_hbm [thread:$0]  %s1116, 128, %s1113, %s1102
        $region104: #{tpu_custom_call.1} parent=59 // pred_fallthru
          _
      $region60: #{tpu_custom_call.1} parent=5 // pred_fallthru
        _
      %p1119 = scmp.le.s32.totalorder 2, %s29
      // Predicated region
      $region105: #{tpu_custom_call.1} parent=5 // pred_check
        %p1120 = pneg %p1119
      $region106: #{tpu_custom_call.1} parent=5 // pred_check_branch
        %1122 = sbr.rel (%p1120) target = $region108
      $region107: #{tpu_custom_call.1} parent=5 // pred_region
        %s1123 = ssub.s32 %s29, 2
        // Predicated region
        $region109: #{tpu_custom_call.1} parent=107 // pred_check
          %p1124 = pneg %p278
        $region110: #{tpu_custom_call.1} parent=107 // pred_check_branch
          %1126 = sbr.rel (%p1124) target = $region112
        $region111: #{tpu_custom_call.1} parent=107 // pred_region
          %s1127 = sand.u32 %s263, 1
          %s1128 = scalar_lea.sflag [#allocation6], %s1127
          %s1129 = sand.u32 %s263, 1
          %s1130 = smul.addr %s1129, 8
          %s1131 = scalar_lea.vmem [#allocation21], %s1130
          %1132 = dma.done %s1128, 128
        $region112: #{tpu_custom_call.1} parent=107 // pred_fallthru
          _
      $region108: #{tpu_custom_call.1} parent=5 // pred_fallthru
        _
    $region6: #{tpu_custom_call.1} parent=1 // loop_footer
      %s33 = sadd.s32 1, %s29
    $region7: #{tpu_custom_call.1} parent=1 // loop_footer_branch
      %28 = sbr.rel target = $region3
    $region8: #{tpu_custom_call.1} parent=1 // loop_exit
      _
    %1133 = vsyncpa [#allocation5], 1
    %s1134 = scalar_lea.sflag [#allocation5], 1
    %1135 = vsyncpa %s1134, 1
    %1136 = vsyncpa [#allocation8], 1
    %s1137 = scalar_lea.sflag [#allocation8], 1
    %1138 = vsyncpa %s1137, 1
    %1139 = vsyncpa [#allocation11], 1
    %1140 = vsyncpa [#allocation14], 1
    %1141 = vsyncpa [#allocation17], 1
    %1142 = vsyncpa [#allocation20], 1
    %1143 = vsyncpa [#allocation6], 1
    %s1144 = scalar_lea.sflag [#allocation6], 1
    %1145 = vsyncpa %s1144, 1

</llo_original>
